<compile_context>
chip_gen: v7x
topology: tpu7x:2x2x1
jax: 0.10.0
libtpu: 0.0.40
codegen_flags: <defaults>
</compile_context>

<pallas_src>
import functools

import jax
import jax.numpy as jnp
import numpy as np
from jax.experimental import pallas as pl
from jax.experimental.pallas import tpu as pltpu

HIDDEN = 64
# Masked pairs rank last.  Scores are raw (pre-sigmoid) logits, so the fill must
# be a large negative value, not -1.0.  (Representable in bf16.)
_NEG_FILL = -1e30


# ---------------------------------------------------------------------------
# Small helpers
# ---------------------------------------------------------------------------
def _round_up(x, m):
    return ((x + m - 1) // m) * m


def _pick_tile(n_pad, cap):
    # Largest lane-dense tile (multiple of 128) <= cap that divides n_pad.
    for t in (4096, 2048, 1024, 512, 256, 128):
        if t <= cap and n_pad % t == 0:
            return t
    return 128


def _pad_rows(a, n_pad):
    n = a.shape[0]
    if n == n_pad:
        return a
    return jnp.pad(a, [(0, n_pad - n)] + [(0, 0)] * (a.ndim - 1))


# ---------------------------------------------------------------------------
# Parameter packing: 16 tiny operands -> 7 packed operands, 128/256-wide lanes.
#   h_sem layout: [h_s(0:64) | h_o(64:128)],  h_pos layout: [h_ps | h_po]
#   out = h_sem @ W2a + h_pos @ W2b + b2, columns:
#         [x_subj(0:64) | p_subj(64:128) | x_obj(128:192) | p_obj(192:256)]
#   feat_subj = out[:, :128], feat_obj = out[:, 128:]  (so score = subj . obj)
# ---------------------------------------------------------------------------
def pack_params(p, w_dtype=jnp.bfloat16):
    (ws1, bs1, ws2, bs2, wo1, bo1, wo2, bo2,
     wps1, bps1, wps2, bps2, wpo1, bpo1, wpo2, bpo2) = p
    z = jnp.zeros((HIDDEN, HIDDEN), jnp.float32)
    w1_sem = jnp.concatenate([ws1, wo1], axis=1).astype(w_dtype)   # (C, 128)
    b1_sem = jnp.concatenate([bs1, bo1], axis=1)                   # (1, 128) f32
    w1_pos = jnp.concatenate([wps1, wpo1], axis=1)                 # (4, 128) f32
    b1_pos = jnp.concatenate([bps1, bpo1], axis=1)                 # (1, 128) f32
    w2_a = jnp.concatenate([
        jnp.concatenate([ws2, z, z, z], axis=1),   # h_s  -> x_subj
        jnp.concatenate([z, z, wo2, z], axis=1),   # h_o  -> x_obj
    ], axis=0).astype(w_dtype)                     # (128, 256)
    w2_b = jnp.concatenate([
        jnp.concatenate([z, wps2, z, z], axis=1),  # h_ps -> p_subj
        jnp.concatenate([z, z, z, wpo2], axis=1),  # h_po -> p_obj
    ], axis=0).astype(w_dtype)                     # (128, 256)
    b2 = jnp.concatenate([bs2, bps2, bo2, bpo2], axis=1)           # (1, 256) f32
    return (w1_sem, b1_sem, w1_pos, b1_pos, w2_a, w2_b, b2)


# ---------------------------------------------------------------------------
# Stage 1: per-proposal feature kernel (tiny, row-tiled)
# ---------------------------------------------------------------------------
def _feature_kernel(inv_size_ref, logits_ref, bbox_ref,
                    w1s_ref, b1s_ref, w1p_ref, b1p_ref,
                    w2a_ref, w2b_ref, b2_ref,
                    fs_ref, fot_ref):
    f32 = jnp.float32
    bf16 = jnp.bfloat16

    # Semantic layer 1: bf16 x bf16 -> f32 acc (MXU), relu.
    x = logits_ref[...].astype(bf16)                              # (tmf, C)
    h_sem = jnp.maximum(
        jnp.dot(x, w1s_ref[...], preferred_element_type=f32) + b1s_ref[...], 0.0)

    # Positional layer 1 as rank-1 VPU products (K=4: not worth the MXU).
    inv_w = inv_size_ref[0]
    inv_h = inv_size_ref[1]
    x1 = bbox_ref[:, 0:1]
    y1 = bbox_ref[:, 1:2]
    x2 = bbox_ref[:, 2:3]
    y2 = bbox_ref[:, 3:4]
    cx = (x1 + x2) * 0.5 * inv_w
    cy = (y1 + y2) * 0.5 * inv_h
    bw = (x2 - x1) * inv_w
    bh = (y2 - y1) * inv_h
    w1p = w1p_ref[...]                                            # (4, 128)
    h_pos = jnp.maximum(
        cx * w1p[0:1, :] + cy * w1p[1:2, :] + bw * w1p[2:3, :] + bh * w1p[3:4, :]
        + b1p_ref[...], 0.0)

    # Fused layer 2: one N=256 output per MXU pass, no lane concat.
    out = (jnp.dot(h_sem.astype(bf16), w2a_ref[...], preferred_element_type=f32)
           + jnp.dot(h_pos.astype(bf16), w2b_ref[...], preferred_element_type=f32)
           + b2_ref[...])                                         # (tmf, 256)

    fs_ref[...] = out[:, :2 * HIDDEN].astype(fs_ref.dtype)
    # Emit object features already transposed (128, tmf): XLU transpose here
    # removes the XLA-level transpose + its HBM round trip.
    fot_ref[...] = jnp.transpose(out[:, 2 * HIDDEN:]).astype(fot_ref.dtype)


def _compute_features(inv_size, logits_p, bboxes_p, packed, tmf,
                      feat_dtype=jnp.bfloat16):
    n_pad, c = logits_p.shape
    grid = (n_pad // tmf,)
    w_specs = [pl.BlockSpec(p.shape, lambda i: (0, 0)) for p in packed]
    return pl.pallas_call(
        _feature_kernel,
        out_shape=(jax.ShapeDtypeStruct((n_pad, 2 * HIDDEN), feat_dtype),
                   jax.ShapeDtypeStruct((2 * HIDDEN, n_pad), feat_dtype)),
        grid=grid,
        in_specs=[pl.BlockSpec(memory_space=pltpu.MemorySpace.SMEM),
                  pl.BlockSpec((tmf, c), lambda i: (i, 0)),
                  pl.BlockSpec((tmf, 4), lambda i: (i, 0))] + w_specs,
        out_specs=(pl.BlockSpec((tmf, 2 * HIDDEN), lambda i: (i, 0)),
                   pl.BlockSpec((2 * HIDDEN, tmf), lambda i: (0, i))),
        compiler_params=pltpu.CompilerParams(dimension_semantics=("parallel",)),
    )(inv_size, logits_p, bboxes_p, *packed)


# ---------------------------------------------------------------------------
# Stage 2: pairwise masked-score kernel (2-D parallel grid over (N_pad, N_pad))
# ---------------------------------------------------------------------------
def _pairwise_kernel(fs_ref, fot_ref, bra_ref, bca_ref, out_ref, *,
                     tm, tn, n_valid, n_pad, filter_non_overlap):
    f32 = jnp.float32
    fill = jnp.asarray(_NEG_FILL, dtype=out_ref.dtype)

    # Single K=128 bf16 contraction, f32 accumulate (fills the MXU depth).
    scores = jnp.dot(fs_ref[...], fot_ref[...], preferred_element_type=f32)

    if filter_non_overlap:
        # Boxes pre-augmented in the wrapper to [x1, y1, x2+1, y2+1]; for
        # well-formed boxes, IoU > 0  <=>  (x2+1 > x1') & (x2'+1 > x1) &
        # (y2+1 > y1') & (y2'+1 > y1): 4 broadcast compares + 3 ANDs.
        x1 = bra_ref[:, 0:1]
        y1 = bra_ref[:, 1:2]
        x2p = bra_ref[:, 2:3]
        y2p = bra_ref[:, 3:4]
        x1t = bca_ref[0:1, :]
        y1t = bca_ref[1:2, :]
        x2pt = bca_ref[2:3, :]
        y2pt = bca_ref[3:4, :]
        overlap = ((x2p > x1t) & (x2pt > x1)) & ((y2p > y1t) & (y2pt > y1))
        out_ref[...] = jnp.where(overlap, scores.astype(out_ref.dtype), fill)
    else:
        out_ref[...] = scores.astype(out_ref.dtype)

    i = pl.program_id(0)
    j = pl.program_id(1)
    row0 = i * tm
    col0 = j * tn

    # Diagonal (self-pair) mask: only tiles whose row/col ranges overlap.
    @pl.when((row0 < col0 + tn) & (col0 < row0 + tm))
    def _():
        row_ids = jax.lax.broadcasted_iota(jnp.int32, (tm, 1), 0) + row0
        col_ids = jax.lax.broadcasted_iota(jnp.int32, (1, tn), 1) + col0
        out_ref[...] = jnp.where(row_ids == col_ids, fill, out_ref[...])

    # Padding mask: only the last row/col tile bands (skipped entirely when
    # there is no padding).
    if n_valid < n_pad:
        @pl.when((row0 + tm > n_valid) | (col0 + tn > n_valid))
        def _():
            row_ok = (jax.lax.broadcasted_iota(jnp.int32, (tm, 1), 0)
                      + row0) < n_valid
            col_ok = (jax.lax.broadcasted_iota(jnp.int32, (1, tn), 1)
                      + col0) < n_valid
            out_ref[...] = jnp.where(row_ok & col_ok, out_ref[...], fill)


def _pairwise_masked(feat_subj, feat_obj_t, boxes_aug, n_valid, n_pad, tm, tn,
                     filter_non_overlap, score_dtype):
    boxes_aug_t = jnp.transpose(boxes_aug)                        # (4, N_pad), tiny
    kernel = functools.partial(_pairwise_kernel, tm=tm, tn=tn, n_valid=n_valid,
                               n_pad=n_pad, filter_non_overlap=filter_non_overlap)
    return pl.pallas_call(
        kernel,
        out_shape=jax.ShapeDtypeStruct((n_pad, n_pad), score_dtype),
        grid=(n_pad // tm, n_pad // tn),
        in_specs=[
            pl.BlockSpec((tm, 2 * HIDDEN), lambda i, j: (i, 0)),   # subject feats
            pl.BlockSpec((2 * HIDDEN, tn), lambda i, j: (0, j)),   # object feats (pre-T)
            pl.BlockSpec((tm, 4), lambda i, j: (i, 0)),            # row boxes [x1,y1,x2+1,y2+1]
            pl.BlockSpec((4, tn), lambda i, j: (0, j)),            # col boxes (transposed)
        ],
        out_specs=pl.BlockSpec((tm, tn), lambda i, j: (i, j)),
        compiler_params=pltpu.CompilerParams(
            dimension_semantics=("parallel", "parallel"),
            # Explicit cap (== scoped default on v6e/v7x); tiles use < 8 MiB
            # double-buffered even at tm=512, tn=2048, so this is safe on all
            # of v5e / v6e / v7x.
            vmem_limit_bytes=32 * 1024 * 1024),
    )(feat_subj, feat_obj_t, boxes_aug, boxes_aug_t)


# ---------------------------------------------------------------------------
# High-level wrappers
# ---------------------------------------------------------------------------
def relpn_masked_scores(logits, bboxes, imsize, params, filter_non_overlap=True,
                        score_dtype=jnp.bfloat16):
    """Masked raw relationshipness scores, padded to (N_pad, N_pad).

    Entry [i, j] = pre-sigmoid score(subject=i, object=j) if the pair is kept
    (i != j, and IoU > 0 when filter_non_overlap), else _NEG_FILL.  sigmoid is
    monotone, so ranking on raw scores equals ranking on sigmoid(relness).
    """
    n = logits.shape[0]
    n_pad = _round_up(n, 128)
    tm = _pick_tile(n_pad, 512)                    # wide rows: fewer grid steps
    tn = _pick_tile(n_pad, min(n_pad, 2048))       # lane-dense output slab
    tmf = _pick_tile(n_pad, 512)

    logits_p = _pad_rows(logits.astype(jnp.float32), n_pad)
    bboxes_p = _pad_rows(bboxes.astype(jnp.float32), n_pad)
    inv_size = jnp.array([1.0 / imsize[0], 1.0 / imsize[1]], dtype=jnp.float32)
    packed = pack_params(params)

    feat_subj, feat_obj_t = _compute_features(inv_size, logits_p, bboxes_p,
                                              packed, tmf)
    # Pre-add TO_REMOVE=1 to x2/y2 once per box (O(N)) so the in-kernel overlap
    # test is pure broadcast compares.
    boxes_aug = bboxes_p + jnp.array([0.0, 0.0, 1.0, 1.0], jnp.float32)
    masked = _pairwise_masked(feat_subj, feat_obj_t, boxes_aug, n, n_pad, tm, tn,
                              filter_non_overlap, score_dtype)
    return masked, n_pad


def relpn_forward_test(logits, bboxes, imsize, params, batch_size_per_image,
                       filter_non_overlap=True, score_dtype=jnp.bfloat16):
    """Inference path of RelPN (_relpnsample_test) for one image.

    Returns (pair_boxes (k,8), idx_pairs (k,2), relness (k,)) for the top-k
    pairs.  NOTE: if fewer than k pairs survive the keep mask, the trailing
    entries are sentinels (relness ~ 0, arbitrary indices) — differs from the
    torch dynamic-shape behavior.
    """
    # TODO(synk): for very large N on v5e, fuse a per-row-tile candidate
    # reduction (two-level top-k) into Stage 2 instead of materializing the
    # full (N_pad, N_pad) matrix for jax.lax.top_k.
    masked, n_pad = relpn_masked_scores(logits, bboxes, imsize, params,
                                        filter_non_overlap, score_dtype)
    vals, order = jax.lax.top_k(masked.reshape(-1), batch_size_per_image)
    subj = order // n_pad
    obj = order % n_pad
    # Only the k winning pairs are gathered; no (N^2, 8) pair materialization.
    pair_boxes = jnp.concatenate([bboxes[subj], bboxes[obj]], axis=1)
    idx_pairs = jnp.stack([subj, obj], axis=1)
    relness = jax.nn.sigmoid(vals.astype(jnp.float32))
    return pair_boxes, idx_pairs, relness


# ---------------------------------------------------------------------------
# Pure-JAX references (for correctness checks)
# ---------------------------------------------------------------------------
def _linear(x, w, b):
    return x @ w + b


def relationshipness_scores_ref(logits, bboxes, imsize, p):
    """Pre-sigmoid pairwise scores, f32 reference."""
    (ws1, bs1, ws2, bs2, wo1, bo1, wo2, bo2,
     wps1, bps1, wps2, bps2, wpo1, bpo1, wpo2, bpo2) = p
    xs = _linear(jnp.maximum(_linear(logits, ws1, bs1), 0.0), ws2, bs2)
    xo = _linear(jnp.maximum(_linear(logits, wo1, bo1), 0.0), wo2, bo2)
    scores = xs @ xo.T
    w_img, h_img = imsize
    cx = (bboxes[:, 0] + bboxes[:, 2]) * 0.5 / w_img
    cy = (bboxes[:, 1] + bboxes[:, 3]) * 0.5 / h_img
    bw = (bboxes[:, 2] - bboxes[:, 0]) / w_img
    bh = (bboxes[:, 3] - bboxes[:, 1]) / h_img
    pos = jnp.stack([cx, cy, bw, bh], axis=1)
    ps = _linear(jnp.maximum(_linear(pos, wps1, bps1), 0.0), wps2, bps2)
    po = _linear(jnp.maximum(_linear(pos, wpo1, bpo1), 0.0), wpo2, bpo2)
    return scores + ps @ po.T


def pairwise_iou_ref(b):
    area = (b[:, 2] - b[:, 0] + 1.0) * (b[:, 3] - b[:, 1] + 1.0)
    lt = jnp.maximum(b[:, None, :2], b[None, :, :2])
    rb = jnp.minimum(b[:, None, 2:], b[None, :, 2:])
    wh = jnp.maximum(rb - lt + 1.0, 0.0)
    inter = wh[..., 0] * wh[..., 1]
    return inter / (area[:, None] + area[None, :] - inter)


# ---------------------------------------------------------------------------
# Deterministic parameter init (nn.Linear default: U(-1/sqrt(fan_in), +))
# ---------------------------------------------------------------------------
def init_linear(key, fan_in, fan_out):
    kw, kb = jax.random.split(key)
    bound = 1.0 / np.sqrt(fan_in)
    w = jax.random.uniform(kw, (fan_in, fan_out), jnp.float32, -bound, bound)
    b = jax.random.uniform(kb, (1, fan_out), jnp.float32, -bound, bound)
    return w, b


def init_relationshipness_params(key, num_classes):
    ks = jax.random.split(key, 8)
    ws1, bs1 = init_linear(ks[0], num_classes, HIDDEN)
    ws2, bs2 = init_linear(ks[1], HIDDEN, HIDDEN)
    wo1, bo1 = init_linear(ks[2], num_classes, HIDDEN)
    wo2, bo2 = init_linear(ks[3], HIDDEN, HIDDEN)
    wps1, bps1 = init_linear(ks[4], 4, HIDDEN)
    wps2, bps2 = init_linear(ks[5], HIDDEN, HIDDEN)
    wpo1, bpo1 = init_linear(ks[6], 4, HIDDEN)
    wpo2, bpo2 = init_linear(ks[7], HIDDEN, HIDDEN)
    return (ws1, bs1, ws2, bs2, wo1, bo1, wo2, bo2,
            wps1, bps1, wps2, bps2, wpo1, bpo1, wpo2, bpo2)


# TODO(synk): training path (Matcher, fg/bg pair sampler, BCE loss over sampled
# pairs) relies on dynamic-shape boolean indexing and stateful sampling; not
# implemented here.

if __name__ == "__main__":
    key = jax.random.PRNGKey(0)
    k_logits, k_xy, k_wh, k_params = jax.random.split(key, 4)

    N = 16            # proposals per image
    NUM_CLASSES = 32  # cfg.MODEL.ROI_BOX_HEAD.NUM_CLASSES (small demo value)
    BATCH_SIZE_PER_IMAGE = 32
    IMSIZE = (64.0, 48.0)  # (width, height)

    logits = jax.random.normal(k_logits, (N, NUM_CLASSES), jnp.float32)
    xy = jax.random.uniform(k_xy, (N, 2), jnp.float32, 0.0, 40.0)
    wh = jax.random.uniform(k_wh, (N, 2), jnp.float32, 4.0, 20.0)
    bboxes = jnp.concatenate([xy, xy + wh], axis=1)

    params = init_relationshipness_params(k_params, NUM_CLASSES)

    # kernel outputs
    masked, n_pad = relpn_masked_scores(logits, bboxes, IMSIZE, params,
                                        filter_non_overlap=True,
                                        score_dtype=jnp.bfloat16)
    pair_boxes, idx_pairs, relness_topk = relpn_forward_test(
        logits, bboxes, IMSIZE, params, BATCH_SIZE_PER_IMAGE,
        filter_non_overlap=True)
    jax.block_until_ready((masked, pair_boxes, idx_pairs, relness_topk))

    # ---- correctness vs pure-JAX references (bf16 matmuls/outputs: loose tol) ----
    ref_scores = relationshipness_scores_ref(logits, bboxes, IMSIZE, params)
    iou = pairwise_iou_ref(bboxes)
    keep = (~jnp.eye(N, dtype=bool)) & (iou > 0)
    ref_masked = jnp.where(keep, ref_scores, _NEG_FILL)

    masked_f32 = np.asarray(jnp.asarray(masked, jnp.float32))
    np.testing.assert_allclose(masked_f32[:N, :N], np.asarray(ref_masked),
                               rtol=5e-2, atol=5e-2)
    # padded rows/cols must all be masked out
    assert np.all(masked_f32[N:, :] <= -1e29)
    assert np.all(masked_f32[:, N:] <= -1e29)

    # top-k winners: indices must be valid pairs, and sigmoid scores must match
    ref_sig = np.asarray(jax.nn.sigmoid(ref_scores))
    keep_np = np.asarray(keep)
    ip = np.asarray(idx_pairs)
    rv = np.asarray(relness_topk)
    if keep_np.sum() >= BATCH_SIZE_PER_IMAGE:
        assert all(s < N and o < N and keep_np[s, o] for s, o in ip)
    for (s, o), r in zip(ip, rv):
        if s < N and o < N and keep_np[s, o]:
            assert abs(float(ref_sig[s, o]) - float(r)) < 2e-2

    assert pair_boxes.shape == (BATCH_SIZE_PER_IMAGE, 8)
    assert idx_pairs.shape == (BATCH_SIZE_PER_IMAGE, 2)
    assert relness_topk.shape == (BATCH_SIZE_PER_IMAGE,)

    print("KERNEL_OK")
</pallas_src>

<mosaic_0001>
module attributes {stable_mosaic.version = 11 : i64} {
  func.func @_feature_kernel(%arg0: i32, %arg1: memref<2xf32, #tpu.memory_space<smem>>, %arg2: memref<128x32xf32, #tpu.memory_space<vmem>>, %arg3: memref<128x4xf32, #tpu.memory_space<vmem>>, %arg4: memref<32x128xbf16, #tpu.memory_space<vmem>>, %arg5: memref<1x128xf32, #tpu.memory_space<vmem>>, %arg6: memref<4x128xf32, #tpu.memory_space<vmem>>, %arg7: memref<1x128xf32, #tpu.memory_space<vmem>>, %arg8: memref<128x256xbf16, #tpu.memory_space<vmem>>, %arg9: memref<128x256xbf16, #tpu.memory_space<vmem>>, %arg10: memref<1x256xf32, #tpu.memory_space<vmem>>, %arg11: memref<128x128xbf16, #tpu.memory_space<vmem>>, %arg12: memref<128x128xbf16, #tpu.memory_space<vmem>>) attributes {dimension_semantics = [#tpu.dimension_semantics<parallel>], iteration_bounds = array<i64: 1>, scalar_prefetch = 0 : i64, scratch_operands = 0 : i64, tpu.core_type = #tpu.core_type<tc>, window_params = [{transform_indices = @transform_0, window_bounds = array<i64: 2>}, {transform_indices = @transform_1, window_bounds = array<i64: 128, 32>}, {transform_indices = @transform_2, window_bounds = array<i64: 128, 4>}, {pipeline_mode = #tpu.pipeline_mode<synchronous>, transform_indices = @transform_3, window_bounds = array<i64: 32, 128>}, {pipeline_mode = #tpu.pipeline_mode<synchronous>, transform_indices = @transform_4, window_bounds = array<i64: 1, 128>}, {pipeline_mode = #tpu.pipeline_mode<synchronous>, transform_indices = @transform_5, window_bounds = array<i64: 4, 128>}, {pipeline_mode = #tpu.pipeline_mode<synchronous>, transform_indices = @transform_6, window_bounds = array<i64: 1, 128>}, {pipeline_mode = #tpu.pipeline_mode<synchronous>, transform_indices = @transform_7, window_bounds = array<i64: 128, 256>}, {pipeline_mode = #tpu.pipeline_mode<synchronous>, transform_indices = @transform_8, window_bounds = array<i64: 128, 256>}, {pipeline_mode = #tpu.pipeline_mode<synchronous>, transform_indices = @transform_9, window_bounds = array<i64: 1, 256>}, {transform_indices = @transform_10, window_bounds = array<i64: 128, 128>}, {transform_indices = @transform_11, window_bounds = array<i64: 128, 128>}]} {
    %c0 = arith.constant 0 : index
    %c0_0 = arith.constant 0 : index
    %0 = vector.load %arg2[%c0, %c0_0] : memref<128x32xf32, #tpu.memory_space<vmem>>, vector<128x32xf32>
    %1 = arith.truncf %0 : vector<128x32xf32> to vector<128x32xbf16>
    %c0_1 = arith.constant 0 : index
    %c0_2 = arith.constant 0 : index
    %2 = vector.load %arg4[%c0_1, %c0_2] : memref<32x128xbf16, #tpu.memory_space<vmem>>, vector<32x128xbf16>
    %cst = arith.constant dense<0.000000e+00> : vector<128x128xf32>
    %3 = tpu.matmul %1, %2, %cst {dimension_numbers = #tpu.dot_dimension_numbers<[1], [0], [0], [1], [0, 0, 1, 1], [], []>} : vector<128x32xbf16>, vector<32x128xbf16>, vector<128x128xf32> -> vector<128x128xf32>
    %c0_3 = arith.constant 0 : index
    %c0_4 = arith.constant 0 : index
    %4 = vector.load %arg5[%c0_3, %c0_4] : memref<1x128xf32, #tpu.memory_space<vmem>>, vector<1x128xf32>
    %5 = vector.broadcast %4 : vector<1x128xf32> to vector<128x128xf32>
    %6 = arith.addf %3, %5 : vector<128x128xf32>
    %cst_5 = arith.constant 0.000000e+00 : f32
    %7 = vector.broadcast %cst_5 : f32 to vector<128x128xf32>
    %8 = arith.maximumf %6, %7 : vector<128x128xf32>
    %c0_6 = arith.constant 0 : index
    %9 = memref.load %arg1[%c0_6] : memref<2xf32, #tpu.memory_space<smem>>
    %c1 = arith.constant 1 : index
    %10 = memref.load %arg1[%c1] : memref<2xf32, #tpu.memory_space<smem>>
    %c0_7 = arith.constant 0 : index
    %c0_8 = arith.constant 0 : index
    %11 = vector.load %arg3[%c0_7, %c0_8] : memref<128x4xf32, #tpu.memory_space<vmem>>, vector<128x1xf32>
    %c0_9 = arith.constant 0 : index
    %c1_10 = arith.constant 1 : index
    %12 = vector.load %arg3[%c0_9, %c1_10] : memref<128x4xf32, #tpu.memory_space<vmem>>, vector<128x1xf32>
    %c0_11 = arith.constant 0 : index
    %c2 = arith.constant 2 : index
    %13 = vector.load %arg3[%c0_11, %c2] : memref<128x4xf32, #tpu.memory_space<vmem>>, vector<128x1xf32>
    %c0_12 = arith.constant 0 : index
    %c3 = arith.constant 3 : index
    %14 = vector.load %arg3[%c0_12, %c3] : memref<128x4xf32, #tpu.memory_space<vmem>>, vector<128x1xf32>
    %15 = arith.addf %11, %13 : vector<128x1xf32>
    %cst_13 = arith.constant 5.000000e-01 : f32
    %16 = vector.broadcast %cst_13 : f32 to vector<128x1xf32>
    %17 = arith.mulf %15, %16 : vector<128x1xf32>
    %18 = vector.broadcast %9 : f32 to vector<128x1xf32>
    %19 = arith.mulf %17, %18 : vector<128x1xf32>
    %20 = arith.addf %12, %14 : vector<128x1xf32>
    %cst_14 = arith.constant 5.000000e-01 : f32
    %21 = vector.broadcast %cst_14 : f32 to vector<128x1xf32>
    %22 = arith.mulf %20, %21 : vector<128x1xf32>
    %23 = vector.broadcast %10 : f32 to vector<128x1xf32>
    %24 = arith.mulf %22, %23 : vector<128x1xf32>
    %25 = arith.subf %13, %11 : vector<128x1xf32>
    %26 = vector.broadcast %9 : f32 to vector<128x1xf32>
    %27 = arith.mulf %25, %26 : vector<128x1xf32>
    %28 = arith.subf %14, %12 : vector<128x1xf32>
    %29 = vector.broadcast %10 : f32 to vector<128x1xf32>
    %30 = arith.mulf %28, %29 : vector<128x1xf32>
    %c0_15 = arith.constant 0 : index
    %c0_16 = arith.constant 0 : index
    %31 = vector.load %arg6[%c0_15, %c0_16] : memref<4x128xf32, #tpu.memory_space<vmem>>, vector<4x128xf32>
    %32 = vector.extract_strided_slice %31 {offsets = [0, 0], sizes = [1, 128], strides = [1, 1]} : vector<4x128xf32> to vector<1x128xf32>
    %33 = vector.broadcast %19 : vector<128x1xf32> to vector<128x128xf32>
    %34 = vector.broadcast %32 : vector<1x128xf32> to vector<128x128xf32>
    %35 = arith.mulf %33, %34 : vector<128x128xf32>
    %36 = vector.extract_strided_slice %31 {offsets = [1, 0], sizes = [1, 128], strides = [1, 1]} : vector<4x128xf32> to vector<1x128xf32>
    %37 = vector.broadcast %24 : vector<128x1xf32> to vector<128x128xf32>
    %38 = vector.broadcast %36 : vector<1x128xf32> to vector<128x128xf32>
    %39 = arith.mulf %37, %38 : vector<128x128xf32>
    %40 = arith.addf %35, %39 : vector<128x128xf32>
    %41 = vector.extract_strided_slice %31 {offsets = [2, 0], sizes = [1, 128], strides = [1, 1]} : vector<4x128xf32> to vector<1x128xf32>
    %42 = vector.broadcast %27 : vector<128x1xf32> to vector<128x128xf32>
    %43 = vector.broadcast %41 : vector<1x128xf32> to vector<128x128xf32>
    %44 = arith.mulf %42, %43 : vector<128x128xf32>
    %45 = arith.addf %40, %44 : vector<128x128xf32>
    %46 = vector.extract_strided_slice %31 {offsets = [3, 0], sizes = [1, 128], strides = [1, 1]} : vector<4x128xf32> to vector<1x128xf32>
    %47 = vector.broadcast %30 : vector<128x1xf32> to vector<128x128xf32>
    %48 = vector.broadcast %46 : vector<1x128xf32> to vector<128x128xf32>
    %49 = arith.mulf %47, %48 : vector<128x128xf32>
    %50 = arith.addf %45, %49 : vector<128x128xf32>
    %c0_17 = arith.constant 0 : index
    %c0_18 = arith.constant 0 : index
    %51 = vector.load %arg7[%c0_17, %c0_18] : memref<1x128xf32, #tpu.memory_space<vmem>>, vector<1x128xf32>
    %52 = vector.broadcast %51 : vector<1x128xf32> to vector<128x128xf32>
    %53 = arith.addf %50, %52 : vector<128x128xf32>
    %cst_19 = arith.constant 0.000000e+00 : f32
    %54 = vector.broadcast %cst_19 : f32 to vector<128x128xf32>
    %55 = arith.maximumf %53, %54 : vector<128x128xf32>
    %56 = arith.truncf %8 : vector<128x128xf32> to vector<128x128xbf16>
    %c0_20 = arith.constant 0 : index
    %c0_21 = arith.constant 0 : index
    %57 = vector.load %arg8[%c0_20, %c0_21] : memref<128x256xbf16, #tpu.memory_space<vmem>>, vector<128x256xbf16>
    %cst_22 = arith.constant dense<0.000000e+00> : vector<128x256xf32>
    %58 = tpu.matmul %56, %57, %cst_22 {dimension_numbers = #tpu.dot_dimension_numbers<[1], [0], [0], [1], [0, 0, 1, 1], [], []>} : vector<128x128xbf16>, vector<128x256xbf16>, vector<128x256xf32> -> vector<128x256xf32>
    %59 = arith.truncf %55 : vector<128x128xf32> to vector<128x128xbf16>
    %c0_23 = arith.constant 0 : index
    %c0_24 = arith.constant 0 : index
    %60 = vector.load %arg9[%c0_23, %c0_24] : memref<128x256xbf16, #tpu.memory_space<vmem>>, vector<128x256xbf16>
    %cst_25 = arith.constant dense<0.000000e+00> : vector<128x256xf32>
    %61 = tpu.matmul %59, %60, %cst_25 {dimension_numbers = #tpu.dot_dimension_numbers<[1], [0], [0], [1], [0, 0, 1, 1], [], []>} : vector<128x128xbf16>, vector<128x256xbf16>, vector<128x256xf32> -> vector<128x256xf32>
    %62 = arith.addf %58, %61 : vector<128x256xf32>
    %c0_26 = arith.constant 0 : index
    %c0_27 = arith.constant 0 : index
    %63 = vector.load %arg10[%c0_26, %c0_27] : memref<1x256xf32, #tpu.memory_space<vmem>>, vector<1x256xf32>
    %64 = vector.broadcast %63 : vector<1x256xf32> to vector<128x256xf32>
    %65 = arith.addf %62, %64 : vector<128x256xf32>
    %66 = vector.extract_strided_slice %65 {offsets = [0, 0], sizes = [128, 128], strides = [1, 1]} : vector<128x256xf32> to vector<128x128xf32>
    %67 = arith.truncf %66 : vector<128x128xf32> to vector<128x128xbf16>
    %c0_28 = arith.constant 0 : index
    %c0_29 = arith.constant 0 : index
    %68 = vector.load %arg11[%c0_28, %c0_29] : memref<128x128xbf16, #tpu.memory_space<vmem>>, vector<128x128xbf16>
    tpu.vector_store %arg11[%c0_28, %c0_29], %67 {strides = array<i32>} : memref<128x128xbf16, #tpu.memory_space<vmem>>, vector<128x128xbf16>,
    %69 = vector.extract_strided_slice %65 {offsets = [0, 128], sizes = [128, 128], strides = [1, 1]} : vector<128x256xf32> to vector<128x128xf32>
    %70 = tpu.transpose %69, [1, 0] : vector<128x128xf32> -> vector<128x128xf32>
    %71 = arith.truncf %70 : vector<128x128xf32> to vector<128x128xbf16>
    %c0_30 = arith.constant 0 : index
    %c0_31 = arith.constant 0 : index
    %72 = vector.load %arg12[%c0_30, %c0_31] : memref<128x128xbf16, #tpu.memory_space<vmem>>, vector<128x128xbf16>
    tpu.vector_store %arg12[%c0_30, %c0_31], %71 {strides = array<i32>} : memref<128x128xbf16, #tpu.memory_space<vmem>>, vector<128x128xbf16>,
    return
  }
  func.func @transform_0(%arg0: i32) -> i32 {
    %c0_i32 = arith.constant 0 : i32
    %c0_i32_0 = arith.constant 0 : i32
    return %c0_i32 : i32
  }
  func.func @transform_1(%arg0: i32) -> (i32, i32) {
    %c0_i32 = arith.constant 0 : i32
    %c0_i32_0 = arith.constant 0 : i32
    return %arg0, %c0_i32 : i32, i32
  }
  func.func @transform_2(%arg0: i32) -> (i32, i32) {
    %c0_i32 = arith.constant 0 : i32
    %c0_i32_0 = arith.constant 0 : i32
    return %arg0, %c0_i32 : i32, i32
  }
  func.func @transform_3(%arg0: i32) -> (i32, i32) {
    %c0_i32 = arith.constant 0 : i32
    %c0_i32_0 = arith.constant 0 : i32
    %c0_i32_1 = arith.constant 0 : i32
    return %c0_i32, %c0_i32_0 : i32, i32
  }
  func.func @transform_4(%arg0: i32) -> (i32, i32) {
    %c0_i32 = arith.constant 0 : i32
    %c0_i32_0 = arith.constant 0 : i32
    %c0_i32_1 = arith.constant 0 : i32
    return %c0_i32, %c0_i32_0 : i32, i32
  }
  func.func @transform_5(%arg0: i32) -> (i32, i32) {
    %c0_i32 = arith.constant 0 : i32
    %c0_i32_0 = arith.constant 0 : i32
    %c0_i32_1 = arith.constant 0 : i32
    return %c0_i32, %c0_i32_0 : i32, i32
  }
  func.func @transform_6(%arg0: i32) -> (i32, i32) {
    %c0_i32 = arith.constant 0 : i32
    %c0_i32_0 = arith.constant 0 : i32
    %c0_i32_1 = arith.constant 0 : i32
    return %c0_i32, %c0_i32_0 : i32, i32
  }
  func.func @transform_7(%arg0: i32) -> (i32, i32) {
    %c0_i32 = arith.constant 0 : i32
    %c0_i32_0 = arith.constant 0 : i32
    %c0_i32_1 = arith.constant 0 : i32
    return %c0_i32, %c0_i32_0 : i32, i32
  }
  func.func @transform_8(%arg0: i32) -> (i32, i32) {
    %c0_i32 = arith.constant 0 : i32
    %c0_i32_0 = arith.constant 0 : i32
    %c0_i32_1 = arith.constant 0 : i32
    return %c0_i32, %c0_i32_0 : i32, i32
  }
  func.func @transform_9(%arg0: i32) -> (i32, i32) {
    %c0_i32 = arith.constant 0 : i32
    %c0_i32_0 = arith.constant 0 : i32
    %c0_i32_1 = arith.constant 0 : i32
    return %c0_i32, %c0_i32_0 : i32, i32
  }
  func.func @transform_10(%arg0: i32) -> (i32, i32) {
    %c0_i32 = arith.constant 0 : i32
    %c0_i32_0 = arith.constant 0 : i32
    return %arg0, %c0_i32 : i32, i32
  }
  func.func @transform_11(%arg0: i32) -> (i32, i32) {
    %c0_i32 = arith.constant 0 : i32
    %c0_i32_0 = arith.constant 0 : i32
    return %c0_i32, %arg0 : i32, i32
  }
}

</mosaic_0001>

<llo_original>
// kernel: tpu_custom_call.1
$region0: #{tpu_custom_call.1}
  #allocation0 [shape = 'u32[]', space=smem, size = 0x4, offset = 0x4, fixed_abs, tag = 'smem constant byte address 0x4 - core index']
  #allocation1 [shape = 'u32[144,128]{1,0:T(1,128)}', space=vmem, size = 0x12000, scoped, tag = 'internal scratch']
  %s0 = inlined_call_operand.vmem [shape: f32[2], index: 0, kind: input, shape index: {}]
  %s1 = inlined_call_operand.vmem [shape: f32[128,32], index: 1, kind: input, shape index: {}]
  %s2 = inlined_call_operand.vmem [shape: f32[128,4], index: 2, kind: input, shape index: {}]
  %s3 = inlined_call_operand.vmem [shape: bf16[32,128], index: 3, kind: input, shape index: {}]
  %s4 = inlined_call_operand.vmem [shape: f32[1,128], index: 4, kind: input, shape index: {}]
  %s5 = inlined_call_operand.vmem [shape: f32[4,128], index: 5, kind: input, shape index: {}]
  %s6 = inlined_call_operand.vmem [shape: f32[1,128], index: 6, kind: input, shape index: {}]
  %s7 = inlined_call_operand.vmem [shape: bf16[128,256], index: 7, kind: input, shape index: {}]
  %s8 = inlined_call_operand.vmem [shape: bf16[128,256], index: 8, kind: input, shape index: {}]
  %s9 = inlined_call_operand.vmem [shape: f32[1,256], index: 9, kind: input, shape index: {}]
  %s10 = inlined_call_operand.hbm [shape: bf16[128,128], index: 10, kind: output, shape index: {0}]
  %s11 = inlined_call_operand.hbm [shape: bf16[128,128], index: 11, kind: output, shape index: {1}]
  %12 = xla_tuple %s10, %s11
  %s13 = sld [smem:[#allocation0]]
  $region62: #{tpu_custom_call.1} parent=0
    _
  %s15 = ssub.s32 1, %s13
  %s16 = scalar_select 0, %s15, %s13
  $region1: #{tpu_custom_call.1} parent=0
    #allocation2 [shape = 'u8[512]{0}', space=smem, size = 0x200, scoped, tag = 'input window, operand 0, single buffered']
    #allocation3 [shape = 's32[1]{0}', space=sflag, size = 0x4, scoped, tag = 'scoped memory for tpu_custom_call.1']
    #allocation4 [shape = 's32[1]{0}', space=sflag, size = 0x4, scoped, tag = 'scoped memory for tpu_custom_call.1']
    #allocation5 [shape = 'u8[32768]{0}', space=vmem, size = 0x8000, scoped, tag = 'output window, operand 0, single buffered']
    #allocation6 [shape = 'u8[32768]{0}', space=vmem, size = 0x8000, scoped, tag = 'output window, operand 1, single buffered']
    #allocation7 [shape = 's32[1]{0}', space=sflag, size = 0x4, scoped, tag = 'scoped memory for tpu_custom_call.1']
    %17 = vsyncpa [#allocation4], 0
    %18 = vsyncpa [#allocation3], 0
    %19 = vsyncpa [#allocation7], 0
    // Predicated region
    $region2: #{tpu_custom_call.1} parent=1 // pred_check
      _
    $region3: #{tpu_custom_call.1} parent=1 // pred_check_branch
      %21 = sbr.rel (0) target = $region5
    $region4: #{tpu_custom_call.1} parent=1 // pred_region
      %s23 = ssub.s32 16, 16
      %24 = vsyncadd [#allocation4], %s23
      %s26 = sshll.u32 %s0, 4
      %s27 = int_to_ptr.vmem [resolvable:$true] %s26
      %29 = dma.vmem_to_smem %s27, 16, [#allocation2], [#allocation4]
    $region5: #{tpu_custom_call.1} parent=1 // pred_fallthru
      _
    // Predicated region
    $region6: #{tpu_custom_call.1} parent=1 // pred_check
      _
    $region7: #{tpu_custom_call.1} parent=1 // pred_check_branch
      %31 = sbr.rel (0) target = $region9
    $region8: #{tpu_custom_call.1} parent=1 // pred_region
      _
    $region9: #{tpu_custom_call.1} parent=1 // pred_fallthru
      _
    // Predicated region
    $region10: #{tpu_custom_call.1} parent=1 // pred_check
      _
    $region11: #{tpu_custom_call.1} parent=1 // pred_check_branch
      %33 = sbr.rel (0) target = $region13
    $region12: #{tpu_custom_call.1} parent=1 // pred_region
      _
    $region13: #{tpu_custom_call.1} parent=1 // pred_fallthru
      _
    // Predicated region
    $region14: #{tpu_custom_call.1} parent=1 // pred_check
      _
    $region15: #{tpu_custom_call.1} parent=1 // pred_check_branch
      %35 = sbr.rel (0) target = $region17
    $region16: #{tpu_custom_call.1} parent=1 // pred_region
      _
    $region17: #{tpu_custom_call.1} parent=1 // pred_fallthru
      _
    // Predicated region
    $region18: #{tpu_custom_call.1} parent=1 // pred_check
      _
    $region19: #{tpu_custom_call.1} parent=1 // pred_check_branch
      %37 = sbr.rel (0) target = $region21
    $region20: #{tpu_custom_call.1} parent=1 // pred_region
      _
    $region21: #{tpu_custom_call.1} parent=1 // pred_fallthru
      _
    // Predicated region
    $region22: #{tpu_custom_call.1} parent=1 // pred_check
      _
    $region23: #{tpu_custom_call.1} parent=1 // pred_check_branch
      %39 = sbr.rel (0) target = $region25
    $region24: #{tpu_custom_call.1} parent=1 // pred_region
      _
    $region25: #{tpu_custom_call.1} parent=1 // pred_fallthru
      _
    // Predicated region
    $region26: #{tpu_custom_call.1} parent=1 // pred_check
      _
    $region27: #{tpu_custom_call.1} parent=1 // pred_check_branch
      %41 = sbr.rel (0) target = $region29
    $region28: #{tpu_custom_call.1} parent=1 // pred_region
      _
    $region29: #{tpu_custom_call.1} parent=1 // pred_fallthru
      _
    // Predicated region
    $region30: #{tpu_custom_call.1} parent=1 // pred_check
      _
    $region31: #{tpu_custom_call.1} parent=1 // pred_check_branch
      %43 = sbr.rel (0) target = $region33
    $region32: #{tpu_custom_call.1} parent=1 // pred_region
      _
    $region33: #{tpu_custom_call.1} parent=1 // pred_fallthru
      _
    // Predicated region
    $region34: #{tpu_custom_call.1} parent=1 // pred_check
      _
    $region35: #{tpu_custom_call.1} parent=1 // pred_check_branch
      %45 = sbr.rel (0) target = $region37
    $region36: #{tpu_custom_call.1} parent=1 // pred_region
      _
    $region37: #{tpu_custom_call.1} parent=1 // pred_fallthru
      _
    // Predicated region
    $region38: #{tpu_custom_call.1} parent=1 // pred_check
      _
    $region39: #{tpu_custom_call.1} parent=1 // pred_check_branch
      %47 = sbr.rel (0) target = $region41
    $region40: #{tpu_custom_call.1} parent=1 // pred_region
      _
    $region41: #{tpu_custom_call.1} parent=1 // pred_fallthru
      _
    // Predicated region
    $region42: #{tpu_custom_call.1} parent=1 // pred_check
      _
    $region43: #{tpu_custom_call.1} parent=1 // pred_check_branch
      %49 = sbr.rel (0) target = $region45
    $region44: #{tpu_custom_call.1} parent=1 // pred_region
      %50 = dma.done [#allocation4], 16
    $region45: #{tpu_custom_call.1} parent=1 // pred_fallthru
      _
    %51 = sfence
    %v53 = vld [vmem:[%s1] sm:$0xff]
    %v54 = vld [vmem:[%s1 + $0x8] sm:$0xff]
    %v55 = vld [vmem:[%s1 + $0x10] sm:$0xff]
    %v56 = vld [vmem:[%s1 + $0x18] sm:$0xff]
    %v57 = vld [vmem:[%s1 + $0x20] sm:$0xff]
    %v58 = vld [vmem:[%s1 + $0x28] sm:$0xff]
    %v59 = vld [vmem:[%s1 + $0x30] sm:$0xff]
    %v60 = vld [vmem:[%s1 + $0x38] sm:$0xff]
    %v61 = vld [vmem:[%s1 + $0x40] sm:$0xff]
    %v62 = vld [vmem:[%s1 + $0x48] sm:$0xff]
    %v63 = vld [vmem:[%s1 + $0x50] sm:$0xff]
    %v64 = vld [vmem:[%s1 + $0x58] sm:$0xff]
    %v65 = vld [vmem:[%s1 + $0x60] sm:$0xff]
    %v66 = vld [vmem:[%s1 + $0x68] sm:$0xff]
    %v67 = vld [vmem:[%s1 + $0x70] sm:$0xff]
    %v68 = vld [vmem:[%s1 + $0x78] sm:$0xff]
    %v69 = vpack.c.bf16 %v54, %v53
    %v70 = vpack.c.bf16 %v56, %v55
    %v71 = vpack.c.bf16 %v58, %v57
    %v72 = vpack.c.bf16 %v60, %v59
    %v73 = vpack.c.bf16 %v62, %v61
    %v74 = vpack.c.bf16 %v64, %v63
    %v75 = vpack.c.bf16 %v66, %v65
    %v76 = vpack.c.bf16 %v68, %v67
    %v77 = vld [vmem:[%s3] sm:$0xf]
    %v78 = vld [vmem:[%s3 + $0x4] sm:$0xf]
    %v79 = vld [vmem:[%s3 + $0x8] sm:$0xf]
    %v80 = vld [vmem:[%s3 + $0xc] sm:$0xf]
    %v81 = vld [vmem:[%s4] sm:$0x1]
    %v83 = vlaneseq
    %v84 = vshrl.u32 %v83, 7
    %v85 = vsub.s32 0, %v84
    %v86 = vrot.slane %v81, %v85
    %v92 = vunpack.c.l.b16 %v77
    %v93 = vunpack.c.l.b16 %v78
    %v94 = vunpack.c.l.b16 %v79
    %v95 = vunpack.c.l.b16 %v80
    %v96 = vpack.c.b16 %v93, %v92
    %v97 = vpack.c.b16 %v95, %v94
    %vm100 = vcmask 261120
    %v102 = vsel %vm100, %v69, 0
    %v105 = vsel %vm100, %v70, 0
    %v108 = vsel %vm100, %v71, 0
    %v111 = vsel %vm100, %v72, 0
    %v114 = vsel %vm100, %v73, 0
    %v117 = vsel %vm100, %v74, 0
    %v120 = vsel %vm100, %v75, 0
    %v123 = vsel %vm100, %v76, 0
    %125 = vmatprep.subr.bf16.mxu0 0
    %126 = vmatpush1.bf16.msra.mxu0 %v96
    %127 = vmatprep.subr.bf16.mxu0 0
    %128 = vmatpush1.bf16.msra.mxu0 %v97
    %129 = vmatprep.subr.bf16.mxu0 0
    %130 = vmatpush1.bf16.msra.mxu0 0
    %131 = vmatprep.subr.bf16.mxu0 0
    %132 = vmatpush1.bf16.msra.mxu0 0
    %133 = vmatprep.subr.bf16.mxu0 0
    %134 = vmatpush1.bf16.msra.mxu0 0
    %135 = vmatprep.subr.bf16.mxu0 0
    %136 = vmatpush1.bf16.msra.mxu0 0
    %137 = vmatprep.subr.bf16.mxu0 0
    %138 = vmatpush1.bf16.msra.mxu0 0
    %139 = vmatprep.subr.bf16.mxu0 0
    %140 = vmatpush1.bf16.msra.mxu0 0
    %141 = vmatprep.subr.bf16.mxu0 0
    %142 = vmatpush1.bf16.msra.mxu0 0
    %143 = vmatprep.subr.bf16.mxu0 0
    %144 = vmatpush1.bf16.msra.mxu0 0
    %145 = vmatprep.subr.bf16.mxu0 0
    %146 = vmatpush1.bf16.msra.mxu0 0
    %147 = vmatprep.subr.bf16.mxu0 0
    %148 = vmatpush1.bf16.msra.mxu0 0
    %149 = vmatprep.subr.bf16.mxu0 0
    %150 = vmatpush1.bf16.msra.mxu0 0
    %151 = vmatprep.subr.bf16.mxu0 0
    %152 = vmatpush1.bf16.msra.mxu0 0
    %153 = vmatprep.subr.bf16.mxu0 0
    %154 = vmatpush1.bf16.msra.mxu0 0
    %155 = vmatprep.subr.bf16.mxu0 0
    %156 = vmatpush1.bf16.msra.mxu0 0
    %157 = vmatprep.mubr.bf16.mxu0 0
    %158 = vmatmul.mubr.bf16.gmra.mrb[0].mxu0 %v102
    %v159 = vpop.f32.mrb[0].mxu0
    %v160 = vadd.f32 %v86, %v159
    %v161 = vpop.f32.mrb[0].mxu0
    %v162 = vpop.f32.mrb[0].mxu0
    %v163 = vadd.f32 %v86, %v162
    %v164 = vpop.f32.mrb[0].mxu0
    %165 = vmatprep.mubr.bf16.mxu0 0
    %166 = vmatmul.mubr.bf16.gmra.mrb[0].mxu0 %v105
    %v167 = vpop.f32.mrb[0].mxu0
    %v168 = vadd.f32 %v86, %v167
    %v169 = vpop.f32.mrb[0].mxu0
    %v170 = vpop.f32.mrb[0].mxu0
    %v171 = vadd.f32 %v86, %v170
    %v172 = vpop.f32.mrb[0].mxu0
    %173 = vmatprep.mubr.bf16.mxu0 0
    %174 = vmatmul.mubr.bf16.gmra.mrb[0].mxu0 %v108
    %v175 = vpop.f32.mrb[0].mxu0
    %v176 = vadd.f32 %v86, %v175
    %v177 = vpop.f32.mrb[0].mxu0
    %v178 = vpop.f32.mrb[0].mxu0
    %v179 = vadd.f32 %v86, %v178
    %v180 = vpop.f32.mrb[0].mxu0
    %181 = vmatprep.mubr.bf16.mxu0 0
    %182 = vmatmul.mubr.bf16.gmra.mrb[0].mxu0 %v111
    %v183 = vpop.f32.mrb[0].mxu0
    %v184 = vadd.f32 %v86, %v183
    %v185 = vpop.f32.mrb[0].mxu0
    %v186 = vpop.f32.mrb[0].mxu0
    %v187 = vadd.f32 %v86, %v186
    %v188 = vpop.f32.mrb[0].mxu0
    %189 = vmatprep.mubr.bf16.mxu0 0
    %190 = vmatmul.mubr.bf16.gmra.mrb[0].mxu0 %v114
    %v191 = vpop.f32.mrb[0].mxu0
    %v192 = vadd.f32 %v86, %v191
    %v193 = vpop.f32.mrb[0].mxu0
    %v194 = vpop.f32.mrb[0].mxu0
    %v195 = vadd.f32 %v86, %v194
    %v196 = vpop.f32.mrb[0].mxu0
    %197 = vmatprep.mubr.bf16.mxu0 0
    %198 = vmatmul.mubr.bf16.gmra.mrb[0].mxu0 %v117
    %v199 = vpop.f32.mrb[0].mxu0
    %v200 = vadd.f32 %v86, %v199
    %v201 = vpop.f32.mrb[0].mxu0
    %v202 = vpop.f32.mrb[0].mxu0
    %v203 = vadd.f32 %v86, %v202
    %v204 = vpop.f32.mrb[0].mxu0
    %205 = vmatprep.mubr.bf16.mxu0 0
    %206 = vmatmul.mubr.bf16.gmra.mrb[0].mxu0 %v120
    %v207 = vpop.f32.mrb[0].mxu0
    %v208 = vadd.f32 %v86, %v207
    %v209 = vpop.f32.mrb[0].mxu0
    %v210 = vpop.f32.mrb[0].mxu0
    %v211 = vadd.f32 %v86, %v210
    %v212 = vpop.f32.mrb[0].mxu0
    %213 = vmatprep.mubr.bf16.mxu0 0
    %214 = vmatmul.mubr.bf16.gmra.mrb[0].mxu0 %v123
    %v215 = vpop.f32.mrb[0].mxu0
    %v216 = vadd.f32 %v86, %v215
    %v217 = vpop.f32.mrb[0].mxu0
    %v218 = vpop.f32.mrb[0].mxu0
    %v219 = vadd.f32 %v86, %v218
    %v220 = vpop.f32.mrb[0].mxu0
    %221 = vdwg.mxu0
    %v222 = vmax.f32 %v160, 0.0
    %v223 = vmax.f32 %v163, 0.0
    %v224 = vmax.f32 %v168, 0.0
    %v225 = vmax.f32 %v171, 0.0
    %v226 = vmax.f32 %v176, 0.0
    %v227 = vmax.f32 %v179, 0.0
    %v228 = vmax.f32 %v184, 0.0
    %v229 = vmax.f32 %v187, 0.0
    %v230 = vmax.f32 %v192, 0.0
    %v231 = vmax.f32 %v195, 0.0
    %v232 = vmax.f32 %v200, 0.0
    %v233 = vmax.f32 %v203, 0.0
    %v234 = vmax.f32 %v208, 0.0
    %v235 = vmax.f32 %v211, 0.0
    %v236 = vmax.f32 %v216, 0.0
    %v237 = vmax.f32 %v219, 0.0
    %s238 = sld [smem:[#allocation2]]
    %s239 = sld [smem:[#allocation2 + $0x1]]
    %v240 = vld [vmem:[%s2] sm:$0xff]
    %v241 = vld [vmem:[%s2 + $0x8] sm:$0xff]
    %v242 = vld [vmem:[%s2 + $0x10] sm:$0xff]
    %v243 = vld [vmem:[%s2 + $0x18] sm:$0xff]
    %v244 = vld [vmem:[%s2 + $0x20] sm:$0xff]
    %v245 = vld [vmem:[%s2 + $0x28] sm:$0xff]
    %v246 = vld [vmem:[%s2 + $0x30] sm:$0xff]
    %v247 = vld [vmem:[%s2 + $0x38] sm:$0xff]
    %v248 = vld [vmem:[%s2 + $0x40] sm:$0xff]
    %v249 = vld [vmem:[%s2 + $0x48] sm:$0xff]
    %v250 = vld [vmem:[%s2 + $0x50] sm:$0xff]
    %v251 = vld [vmem:[%s2 + $0x58] sm:$0xff]
    %v252 = vld [vmem:[%s2 + $0x60] sm:$0xff]
    %v253 = vld [vmem:[%s2 + $0x68] sm:$0xff]
    %v254 = vld [vmem:[%s2 + $0x70] sm:$0xff]
    %v255 = vld [vmem:[%s2 + $0x78] sm:$0xff]
    %272 = vrot.lane.b32.xlu0 %v240, 126
    %v273 = vpop.permute.xlu0 %272
    %274 = vrot.lane.b32.xlu0 %v241, 126
    %v275 = vpop.permute.xlu0 %274
    %276 = vrot.lane.b32.xlu0 %v242, 126
    %v277 = vpop.permute.xlu0 %276
    %278 = vrot.lane.b32.xlu0 %v243, 126
    %v279 = vpop.permute.xlu0 %278
    %280 = vrot.lane.b32.xlu0 %v244, 126
    %v281 = vpop.permute.xlu0 %280
    %282 = vrot.lane.b32.xlu0 %v245, 126
    %v283 = vpop.permute.xlu0 %282
    %284 = vrot.lane.b32.xlu0 %v246, 126
    %v285 = vpop.permute.xlu0 %284
    %286 = vrot.lane.b32.xlu0 %v247, 126
    %v287 = vpop.permute.xlu0 %286
    %288 = vrot.lane.b32.xlu0 %v248, 126
    %v289 = vpop.permute.xlu0 %288
    %290 = vrot.lane.b32.xlu0 %v249, 126
    %v291 = vpop.permute.xlu0 %290
    %292 = vrot.lane.b32.xlu0 %v250, 126
    %v293 = vpop.permute.xlu0 %292
    %294 = vrot.lane.b32.xlu0 %v251, 126
    %v295 = vpop.permute.xlu0 %294
    %296 = vrot.lane.b32.xlu0 %v252, 126
    %v297 = vpop.permute.xlu0 %296
    %298 = vrot.lane.b32.xlu0 %v253, 126
    %v299 = vpop.permute.xlu0 %298
    %300 = vrot.lane.b32.xlu0 %v254, 126
    %v301 = vpop.permute.xlu0 %300
    %302 = vrot.lane.b32.xlu0 %v255, 126
    %v303 = vpop.permute.xlu0 %302
    %v320 = vadd.f32 %v240, %v273
    %v321 = vadd.f32 %v241, %v275
    %v322 = vadd.f32 %v242, %v277
    %v323 = vadd.f32 %v243, %v279
    %v324 = vadd.f32 %v244, %v281
    %v325 = vadd.f32 %v245, %v283
    %v326 = vadd.f32 %v246, %v285
    %v327 = vadd.f32 %v247, %v287
    %v328 = vadd.f32 %v248, %v289
    %v329 = vadd.f32 %v249, %v291
    %v330 = vadd.f32 %v250, %v293
    %v331 = vadd.f32 %v251, %v295
    %v332 = vadd.f32 %v252, %v297
    %v333 = vadd.f32 %v253, %v299
    %v334 = vadd.f32 %v254, %v301
    %v335 = vadd.f32 %v255, %v303
    %v336 = vmul.f32 %v320, 0.5
    %v337 = vmul.f32 %v321, 0.5
    %v338 = vmul.f32 %v322, 0.5
    %v339 = vmul.f32 %v323, 0.5
    %v340 = vmul.f32 %v324, 0.5
    %v341 = vmul.f32 %v325, 0.5
    %v342 = vmul.f32 %v326, 0.5
    %v343 = vmul.f32 %v327, 0.5
    %v344 = vmul.f32 %v328, 0.5
    %v345 = vmul.f32 %v329, 0.5
    %v346 = vmul.f32 %v330, 0.5
    %v347 = vmul.f32 %v331, 0.5
    %v348 = vmul.f32 %v332, 0.5
    %v349 = vmul.f32 %v333, 0.5
    %v350 = vmul.f32 %v334, 0.5
    %v351 = vmul.f32 %v335, 0.5
    %v352 = vstv %s238
    %v353 = vmul.f32 %v336, %v352
    %v354 = vmul.f32 %v337, %v352
    %v355 = vmul.f32 %v338, %v352
    %v356 = vmul.f32 %v339, %v352
    %v357 = vmul.f32 %v340, %v352
    %v358 = vmul.f32 %v341, %v352
    %v359 = vmul.f32 %v342, %v352
    %v360 = vmul.f32 %v343, %v352
    %v361 = vmul.f32 %v344, %v352
    %v362 = vmul.f32 %v345, %v352
    %v363 = vmul.f32 %v346, %v352
    %v364 = vmul.f32 %v347, %v352
    %v365 = vmul.f32 %v348, %v352
    %v366 = vmul.f32 %v349, %v352
    %v367 = vmul.f32 %v350, %v352
    %v368 = vmul.f32 %v351, %v352
    %v369 = vstv %s239
    %v370 = vmul.f32 %v336, %v369
    %v371 = vmul.f32 %v337, %v369
    %v372 = vmul.f32 %v338, %v369
    %v373 = vmul.f32 %v339, %v369
    %v374 = vmul.f32 %v340, %v369
    %v375 = vmul.f32 %v341, %v369
    %v376 = vmul.f32 %v342, %v369
    %v377 = vmul.f32 %v343, %v369
    %v378 = vmul.f32 %v344, %v369
    %v379 = vmul.f32 %v345, %v369
    %v380 = vmul.f32 %v346, %v369
    %v381 = vmul.f32 %v347, %v369
    %v382 = vmul.f32 %v348, %v369
    %v383 = vmul.f32 %v349, %v369
    %v384 = vmul.f32 %v350, %v369
    %v385 = vmul.f32 %v351, %v369
    %386 = vrot.lane.b32.xlu0 %v240, 2
    %v387 = vpop.permute.xlu0 %386
    %388 = vrot.lane.b32.xlu0 %v241, 2
    %v389 = vpop.permute.xlu0 %388
    %390 = vrot.lane.b32.xlu0 %v242, 2
    %v391 = vpop.permute.xlu0 %390
    %392 = vrot.lane.b32.xlu0 %v243, 2
    %v393 = vpop.permute.xlu0 %392
    %394 = vrot.lane.b32.xlu0 %v244, 2
    %v395 = vpop.permute.xlu0 %394
    %396 = vrot.lane.b32.xlu0 %v245, 2
    %v397 = vpop.permute.xlu0 %396
    %398 = vrot.lane.b32.xlu0 %v246, 2
    %v399 = vpop.permute.xlu0 %398
    %400 = vrot.lane.b32.xlu0 %v247, 2
    %v401 = vpop.permute.xlu0 %400
    %402 = vrot.lane.b32.xlu0 %v248, 2
    %v403 = vpop.permute.xlu0 %402
    %404 = vrot.lane.b32.xlu0 %v249, 2
    %v405 = vpop.permute.xlu0 %404
    %406 = vrot.lane.b32.xlu0 %v250, 2
    %v407 = vpop.permute.xlu0 %406
    %408 = vrot.lane.b32.xlu0 %v251, 2
    %v409 = vpop.permute.xlu0 %408
    %410 = vrot.lane.b32.xlu0 %v252, 2
    %v411 = vpop.permute.xlu0 %410
    %412 = vrot.lane.b32.xlu0 %v253, 2
    %v413 = vpop.permute.xlu0 %412
    %414 = vrot.lane.b32.xlu0 %v254, 2
    %v415 = vpop.permute.xlu0 %414
    %416 = vrot.lane.b32.xlu0 %v255, 2
    %v417 = vpop.permute.xlu0 %416
    %v434 = vsub.f32 %v240, %v387
    %v435 = vsub.f32 %v241, %v389
    %v436 = vsub.f32 %v242, %v391
    %v437 = vsub.f32 %v243, %v393
    %v438 = vsub.f32 %v244, %v395
    %v439 = vsub.f32 %v245, %v397
    %v440 = vsub.f32 %v246, %v399
    %v441 = vsub.f32 %v247, %v401
    %v442 = vsub.f32 %v248, %v403
    %v443 = vsub.f32 %v249, %v405
    %v444 = vsub.f32 %v250, %v407
    %v445 = vsub.f32 %v251, %v409
    %v446 = vsub.f32 %v252, %v411
    %v447 = vsub.f32 %v253, %v413
    %v448 = vsub.f32 %v254, %v415
    %v449 = vsub.f32 %v255, %v417
    %v450 = vmul.f32 %v434, %v352
    %v451 = vmul.f32 %v435, %v352
    %v452 = vmul.f32 %v436, %v352
    %v453 = vmul.f32 %v437, %v352
    %v454 = vmul.f32 %v438, %v352
    %v455 = vmul.f32 %v439, %v352
    %v456 = vmul.f32 %v440, %v352
    %v457 = vmul.f32 %v441, %v352
    %v458 = vmul.f32 %v442, %v352
    %v459 = vmul.f32 %v443, %v352
    %v460 = vmul.f32 %v444, %v352
    %v461 = vmul.f32 %v445, %v352
    %v462 = vmul.f32 %v446, %v352
    %v463 = vmul.f32 %v447, %v352
    %v464 = vmul.f32 %v448, %v352
    %v465 = vmul.f32 %v449, %v352
    %v466 = vmul.f32 %v434, %v369
    %v467 = vmul.f32 %v435, %v369
    %v468 = vmul.f32 %v436, %v369
    %v469 = vmul.f32 %v437, %v369
    %v470 = vmul.f32 %v438, %v369
    %v471 = vmul.f32 %v439, %v369
    %v472 = vmul.f32 %v440, %v369
    %v473 = vmul.f32 %v441, %v369
    %v474 = vmul.f32 %v442, %v369
    %v475 = vmul.f32 %v443, %v369
    %v476 = vmul.f32 %v444, %v369
    %v477 = vmul.f32 %v445, %v369
    %v478 = vmul.f32 %v446, %v369
    %v479 = vmul.f32 %v447, %v369
    %v480 = vmul.f32 %v448, %v369
    %v481 = vmul.f32 %v449, %v369
    %v482 = vld [vmem:[%s5] sm:$0xf]
    %484 = vset.pattern.permute.xlu0 0
    %485 = vperm.xlu0 %484, %v353
    %v486 = vpop.permute.xlu0 %485
    %489 = vset.pattern.permute.xlu0 0
    %490 = vperm.xlu0 %489, %v354
    %v491 = vpop.permute.xlu0 %490
    %494 = vset.pattern.permute.xlu0 0
    %495 = vperm.xlu0 %494, %v355
    %v496 = vpop.permute.xlu0 %495
    %499 = vset.pattern.permute.xlu0 0
    %500 = vperm.xlu0 %499, %v356
    %v501 = vpop.permute.xlu0 %500
    %504 = vset.pattern.permute.xlu0 0
    %505 = vperm.xlu0 %504, %v357
    %v506 = vpop.permute.xlu0 %505
    %509 = vset.pattern.permute.xlu0 0
    %510 = vperm.xlu0 %509, %v358
    %v511 = vpop.permute.xlu0 %510
    %514 = vset.pattern.permute.xlu0 0
    %515 = vperm.xlu0 %514, %v359
    %v516 = vpop.permute.xlu0 %515
    %519 = vset.pattern.permute.xlu0 0
    %520 = vperm.xlu0 %519, %v360
    %v521 = vpop.permute.xlu0 %520
    %524 = vset.pattern.permute.xlu0 0
    %525 = vperm.xlu0 %524, %v361
    %v526 = vpop.permute.xlu0 %525
    %529 = vset.pattern.permute.xlu0 0
    %530 = vperm.xlu0 %529, %v362
    %v531 = vpop.permute.xlu0 %530
    %534 = vset.pattern.permute.xlu0 0
    %535 = vperm.xlu0 %534, %v363
    %v536 = vpop.permute.xlu0 %535
    %539 = vset.pattern.permute.xlu0 0
    %540 = vperm.xlu0 %539, %v364
    %v541 = vpop.permute.xlu0 %540
    %544 = vset.pattern.permute.xlu0 0
    %545 = vperm.xlu0 %544, %v365
    %v546 = vpop.permute.xlu0 %545
    %549 = vset.pattern.permute.xlu0 0
    %550 = vperm.xlu0 %549, %v366
    %v551 = vpop.permute.xlu0 %550
    %554 = vset.pattern.permute.xlu0 0
    %555 = vperm.xlu0 %554, %v367
    %v556 = vpop.permute.xlu0 %555
    %559 = vset.pattern.permute.xlu0 0
    %560 = vperm.xlu0 %559, %v368
    %v561 = vpop.permute.xlu0 %560
    %v563 = vlaneseq
    %v564 = vshrl.u32 %v563, 7
    %v565 = vsub.s32 0, %v564
    %v566 = vrot.slane %v482, %v565
    %v567 = vmul.f32 %v486, %v566
    %v568 = vmul.f32 %v491, %v566
    %v569 = vmul.f32 %v496, %v566
    %v570 = vmul.f32 %v501, %v566
    %v571 = vmul.f32 %v506, %v566
    %v572 = vmul.f32 %v511, %v566
    %v573 = vmul.f32 %v516, %v566
    %v574 = vmul.f32 %v521, %v566
    %v575 = vmul.f32 %v526, %v566
    %v576 = vmul.f32 %v531, %v566
    %v577 = vmul.f32 %v536, %v566
    %v578 = vmul.f32 %v541, %v566
    %v579 = vmul.f32 %v546, %v566
    %v580 = vmul.f32 %v551, %v566
    %v581 = vmul.f32 %v556, %v566
    %v582 = vmul.f32 %v561, %v566
    %584 = vset.pattern.permute.xlu0 1
    %585 = vperm.xlu0 %584, %v370
    %v586 = vpop.permute.xlu0 %585
    %589 = vset.pattern.permute.xlu0 1
    %590 = vperm.xlu0 %589, %v371
    %v591 = vpop.permute.xlu0 %590
    %594 = vset.pattern.permute.xlu0 1
    %595 = vperm.xlu0 %594, %v372
    %v596 = vpop.permute.xlu0 %595
    %599 = vset.pattern.permute.xlu0 1
    %600 = vperm.xlu0 %599, %v373
    %v601 = vpop.permute.xlu0 %600
    %604 = vset.pattern.permute.xlu0 1
    %605 = vperm.xlu0 %604, %v374
    %v606 = vpop.permute.xlu0 %605
    %609 = vset.pattern.permute.xlu0 1
    %610 = vperm.xlu0 %609, %v375
    %v611 = vpop.permute.xlu0 %610
    %614 = vset.pattern.permute.xlu0 1
    %615 = vperm.xlu0 %614, %v376
    %v616 = vpop.permute.xlu0 %615
    %619 = vset.pattern.permute.xlu0 1
    %620 = vperm.xlu0 %619, %v377
    %v621 = vpop.permute.xlu0 %620
    %624 = vset.pattern.permute.xlu0 1
    %625 = vperm.xlu0 %624, %v378
    %v626 = vpop.permute.xlu0 %625
    %629 = vset.pattern.permute.xlu0 1
    %630 = vperm.xlu0 %629, %v379
    %v631 = vpop.permute.xlu0 %630
    %634 = vset.pattern.permute.xlu0 1
    %635 = vperm.xlu0 %634, %v380
    %v636 = vpop.permute.xlu0 %635
    %639 = vset.pattern.permute.xlu0 1
    %640 = vperm.xlu0 %639, %v381
    %v641 = vpop.permute.xlu0 %640
    %644 = vset.pattern.permute.xlu0 1
    %645 = vperm.xlu0 %644, %v382
    %v646 = vpop.permute.xlu0 %645
    %649 = vset.pattern.permute.xlu0 1
    %650 = vperm.xlu0 %649, %v383
    %v651 = vpop.permute.xlu0 %650
    %654 = vset.pattern.permute.xlu0 1
    %655 = vperm.xlu0 %654, %v384
    %v656 = vpop.permute.xlu0 %655
    %659 = vset.pattern.permute.xlu0 1
    %660 = vperm.xlu0 %659, %v385
    %v661 = vpop.permute.xlu0 %660
    %v663 = vlaneseq
    %v664 = vshrl.u32 %v663, 7
    %v665 = vsub.s32 1, %v664
    %v666 = vrot.slane %v482, %v665
    %v667 = vmul.f32 %v586, %v666
    %v668 = vmul.f32 %v591, %v666
    %v669 = vmul.f32 %v596, %v666
    %v670 = vmul.f32 %v601, %v666
    %v671 = vmul.f32 %v606, %v666
    %v672 = vmul.f32 %v611, %v666
    %v673 = vmul.f32 %v616, %v666
    %v674 = vmul.f32 %v621, %v666
    %v675 = vmul.f32 %v626, %v666
    %v676 = vmul.f32 %v631, %v666
    %v677 = vmul.f32 %v636, %v666
    %v678 = vmul.f32 %v641, %v666
    %v679 = vmul.f32 %v646, %v666
    %v680 = vmul.f32 %v651, %v666
    %v681 = vmul.f32 %v656, %v666
    %v682 = vmul.f32 %v661, %v666
    %v683 = vadd.f32 %v567, %v667
    %v684 = vadd.f32 %v568, %v668
    %v685 = vadd.f32 %v569, %v669
    %v686 = vadd.f32 %v570, %v670
    %v687 = vadd.f32 %v571, %v671
    %v688 = vadd.f32 %v572, %v672
    %v689 = vadd.f32 %v573, %v673
    %v690 = vadd.f32 %v574, %v674
    %v691 = vadd.f32 %v575, %v675
    %v692 = vadd.f32 %v576, %v676
    %v693 = vadd.f32 %v577, %v677
    %v694 = vadd.f32 %v578, %v678
    %v695 = vadd.f32 %v579, %v679
    %v696 = vadd.f32 %v580, %v680
    %v697 = vadd.f32 %v581, %v681
    %v698 = vadd.f32 %v582, %v682
    %700 = vset.pattern.permute.xlu0 2
    %701 = vperm.xlu0 %700, %v450
    %v702 = vpop.permute.xlu0 %701
    %705 = vset.pattern.permute.xlu0 2
    %706 = vperm.xlu0 %705, %v451
    %v707 = vpop.permute.xlu0 %706
    %710 = vset.pattern.permute.xlu0 2
    %711 = vperm.xlu0 %710, %v452
    %v712 = vpop.permute.xlu0 %711
    %715 = vset.pattern.permute.xlu0 2
    %716 = vperm.xlu0 %715, %v453
    %v717 = vpop.permute.xlu0 %716
    %720 = vset.pattern.permute.xlu0 2
    %721 = vperm.xlu0 %720, %v454
    %v722 = vpop.permute.xlu0 %721
    %725 = vset.pattern.permute.xlu0 2
    %726 = vperm.xlu0 %725, %v455
    %v727 = vpop.permute.xlu0 %726
    %730 = vset.pattern.permute.xlu0 2
    %731 = vperm.xlu0 %730, %v456
    %v732 = vpop.permute.xlu0 %731
    %735 = vset.pattern.permute.xlu0 2
    %736 = vperm.xlu0 %735, %v457
    %v737 = vpop.permute.xlu0 %736
    %740 = vset.pattern.permute.xlu0 2
    %741 = vperm.xlu0 %740, %v458
    %v742 = vpop.permute.xlu0 %741
    %745 = vset.pattern.permute.xlu0 2
    %746 = vperm.xlu0 %745, %v459
    %v747 = vpop.permute.xlu0 %746
    %750 = vset.pattern.permute.xlu0 2
    %751 = vperm.xlu0 %750, %v460
    %v752 = vpop.permute.xlu0 %751
    %755 = vset.pattern.permute.xlu0 2
    %756 = vperm.xlu0 %755, %v461
    %v757 = vpop.permute.xlu0 %756
    %760 = vset.pattern.permute.xlu0 2
    %761 = vperm.xlu0 %760, %v462
    %v762 = vpop.permute.xlu0 %761
    %765 = vset.pattern.permute.xlu0 2
    %766 = vperm.xlu0 %765, %v463
    %v767 = vpop.permute.xlu0 %766
    %770 = vset.pattern.permute.xlu0 2
    %771 = vperm.xlu0 %770, %v464
    %v772 = vpop.permute.xlu0 %771
    %775 = vset.pattern.permute.xlu0 2
    %776 = vperm.xlu0 %775, %v465
    %v777 = vpop.permute.xlu0 %776
    %v779 = vlaneseq
    %v780 = vshrl.u32 %v779, 7
    %v781 = vsub.s32 2, %v780
    %v782 = vrot.slane %v482, %v781
    %v783 = vmul.f32 %v702, %v782
    %v784 = vmul.f32 %v707, %v782
    %v785 = vmul.f32 %v712, %v782
    %v786 = vmul.f32 %v717, %v782
    %v787 = vmul.f32 %v722, %v782
    %v788 = vmul.f32 %v727, %v782
    %v789 = vmul.f32 %v732, %v782
    %v790 = vmul.f32 %v737, %v782
    %v791 = vmul.f32 %v742, %v782
    %v792 = vmul.f32 %v747, %v782
    %v793 = vmul.f32 %v752, %v782
    %v794 = vmul.f32 %v757, %v782
    %v795 = vmul.f32 %v762, %v782
    %v796 = vmul.f32 %v767, %v782
    %v797 = vmul.f32 %v772, %v782
    %v798 = vmul.f32 %v777, %v782
    %v799 = vadd.f32 %v683, %v783
    %v800 = vadd.f32 %v684, %v784
    %v801 = vadd.f32 %v685, %v785
    %v802 = vadd.f32 %v686, %v786
    %v803 = vadd.f32 %v687, %v787
    %v804 = vadd.f32 %v688, %v788
    %v805 = vadd.f32 %v689, %v789
    %v806 = vadd.f32 %v690, %v790
    %v807 = vadd.f32 %v691, %v791
    %v808 = vadd.f32 %v692, %v792
    %v809 = vadd.f32 %v693, %v793
    %v810 = vadd.f32 %v694, %v794
    %v811 = vadd.f32 %v695, %v795
    %v812 = vadd.f32 %v696, %v796
    %v813 = vadd.f32 %v697, %v797
    %v814 = vadd.f32 %v698, %v798
    %816 = vset.pattern.permute.xlu0 3
    %817 = vperm.xlu0 %816, %v466
    %v818 = vpop.permute.xlu0 %817
    %821 = vset.pattern.permute.xlu0 3
    %822 = vperm.xlu0 %821, %v467
    %v823 = vpop.permute.xlu0 %822
    %826 = vset.pattern.permute.xlu0 3
    %827 = vperm.xlu0 %826, %v468
    %v828 = vpop.permute.xlu0 %827
    %831 = vset.pattern.permute.xlu0 3
    %832 = vperm.xlu0 %831, %v469
    %v833 = vpop.permute.xlu0 %832
    %836 = vset.pattern.permute.xlu0 3
    %837 = vperm.xlu0 %836, %v470
    %v838 = vpop.permute.xlu0 %837
    %841 = vset.pattern.permute.xlu0 3
    %842 = vperm.xlu0 %841, %v471
    %v843 = vpop.permute.xlu0 %842
    %846 = vset.pattern.permute.xlu0 3
    %847 = vperm.xlu0 %846, %v472
    %v848 = vpop.permute.xlu0 %847
    %851 = vset.pattern.permute.xlu0 3
    %852 = vperm.xlu0 %851, %v473
    %v853 = vpop.permute.xlu0 %852
    %856 = vset.pattern.permute.xlu0 3
    %857 = vperm.xlu0 %856, %v474
    %v858 = vpop.permute.xlu0 %857
    %861 = vset.pattern.permute.xlu0 3
    %862 = vperm.xlu0 %861, %v475
    %v863 = vpop.permute.xlu0 %862
    %866 = vset.pattern.permute.xlu0 3
    %867 = vperm.xlu0 %866, %v476
    %v868 = vpop.permute.xlu0 %867
    %871 = vset.pattern.permute.xlu0 3
    %872 = vperm.xlu0 %871, %v477
    %v873 = vpop.permute.xlu0 %872
    %876 = vset.pattern.permute.xlu0 3
    %877 = vperm.xlu0 %876, %v478
    %v878 = vpop.permute.xlu0 %877
    %881 = vset.pattern.permute.xlu0 3
    %882 = vperm.xlu0 %881, %v479
    %v883 = vpop.permute.xlu0 %882
    %886 = vset.pattern.permute.xlu0 3
    %887 = vperm.xlu0 %886, %v480
    %v888 = vpop.permute.xlu0 %887
    %891 = vset.pattern.permute.xlu0 3
    %892 = vperm.xlu0 %891, %v481
    %v893 = vpop.permute.xlu0 %892
    %v895 = vlaneseq
    %v896 = vshrl.u32 %v895, 7
    %v897 = vsub.s32 3, %v896
    %v898 = vrot.slane %v482, %v897
    %v899 = vmul.f32 %v818, %v898
    %v900 = vmul.f32 %v823, %v898
    %v901 = vmul.f32 %v828, %v898
    %v902 = vmul.f32 %v833, %v898
    %v903 = vmul.f32 %v838, %v898
    %v904 = vmul.f32 %v843, %v898
    %v905 = vmul.f32 %v848, %v898
    %v906 = vmul.f32 %v853, %v898
    %v907 = vmul.f32 %v858, %v898
    %v908 = vmul.f32 %v863, %v898
    %v909 = vmul.f32 %v868, %v898
    %v910 = vmul.f32 %v873, %v898
    %v911 = vmul.f32 %v878, %v898
    %v912 = vmul.f32 %v883, %v898
    %v913 = vmul.f32 %v888, %v898
    %v914 = vmul.f32 %v893, %v898
    %v915 = vadd.f32 %v799, %v899
    %v916 = vadd.f32 %v800, %v900
    %v917 = vadd.f32 %v801, %v901
    %v918 = vadd.f32 %v802, %v902
    %v919 = vadd.f32 %v803, %v903
    %v920 = vadd.f32 %v804, %v904
    %v921 = vadd.f32 %v805, %v905
    %v922 = vadd.f32 %v806, %v906
    %v923 = vadd.f32 %v807, %v907
    %v924 = vadd.f32 %v808, %v908
    %v925 = vadd.f32 %v809, %v909
    %v926 = vadd.f32 %v810, %v910
    %v927 = vadd.f32 %v811, %v911
    %v928 = vadd.f32 %v812, %v912
    %v929 = vadd.f32 %v813, %v913
    %v930 = vadd.f32 %v814, %v914
    %v931 = vld [vmem:[%s6] sm:$0x1]
    %v933 = vlaneseq
    %v934 = vshrl.u32 %v933, 7
    %v935 = vsub.s32 0, %v934
    %v936 = vrot.slane %v931, %v935
    %v938 = vadd.f32 %v915, %v936
    %v939 = vadd.f32 %v916, %v936
    %v940 = vadd.f32 %v917, %v936
    %v941 = vadd.f32 %v918, %v936
    %v942 = vadd.f32 %v919, %v936
    %v943 = vadd.f32 %v920, %v936
    %v944 = vadd.f32 %v921, %v936
    %v945 = vadd.f32 %v922, %v936
    %v946 = vadd.f32 %v923, %v936
    %v947 = vadd.f32 %v924, %v936
    %v948 = vadd.f32 %v925, %v936
    %v949 = vadd.f32 %v926, %v936
    %v950 = vadd.f32 %v927, %v936
    %v951 = vadd.f32 %v928, %v936
    %v952 = vadd.f32 %v929, %v936
    %v953 = vadd.f32 %v930, %v936
    %v954 = vmax.f32 %v938, 0.0
    %v955 = vmax.f32 %v939, 0.0
    %v956 = vmax.f32 %v940, 0.0
    %v957 = vmax.f32 %v941, 0.0
    %v958 = vmax.f32 %v942, 0.0
    %v959 = vmax.f32 %v943, 0.0
    %v960 = vmax.f32 %v944, 0.0
    %v961 = vmax.f32 %v945, 0.0
    %v962 = vmax.f32 %v946, 0.0
    %v963 = vmax.f32 %v947, 0.0
    %v964 = vmax.f32 %v948, 0.0
    %v965 = vmax.f32 %v949, 0.0
    %v966 = vmax.f32 %v950, 0.0
    %v967 = vmax.f32 %v951, 0.0
    %v968 = vmax.f32 %v952, 0.0
    %v969 = vmax.f32 %v953, 0.0
    %v970 = vpack.c.bf16 %v223, %v222
    %v971 = vpack.c.bf16 %v225, %v224
    %v972 = vpack.c.bf16 %v227, %v226
    %v973 = vpack.c.bf16 %v229, %v228
    %v974 = vpack.c.bf16 %v231, %v230
    %v975 = vpack.c.bf16 %v233, %v232
    %v976 = vpack.c.bf16 %v235, %v234
    %v977 = vpack.c.bf16 %v237, %v236
    %v978 = vld [vmem:[%s7] sm:$0xff]
    %v979 = vld [vmem:[%s7 + $0x8] sm:$0xff]
    %v980 = vld [vmem:[%s7 + $0x10] sm:$0xff]
    %v981 = vld [vmem:[%s7 + $0x18] sm:$0xff]
    %v982 = vld [vmem:[%s7 + $0x20] sm:$0xff]
    %v983 = vld [vmem:[%s7 + $0x28] sm:$0xff]
    %v984 = vld [vmem:[%s7 + $0x30] sm:$0xff]
    %v985 = vld [vmem:[%s7 + $0x38] sm:$0xff]
    %v986 = vld [vmem:[%s7 + $0x40] sm:$0xff]
    %v987 = vld [vmem:[%s7 + $0x48] sm:$0xff]
    %v988 = vld [vmem:[%s7 + $0x50] sm:$0xff]
    %v989 = vld [vmem:[%s7 + $0x58] sm:$0xff]
    %v990 = vld [vmem:[%s7 + $0x60] sm:$0xff]
    %v991 = vld [vmem:[%s7 + $0x68] sm:$0xff]
    %v992 = vld [vmem:[%s7 + $0x70] sm:$0xff]
    %v993 = vld [vmem:[%s7 + $0x78] sm:$0xff]
    %v994 = vpack.c.bf16 %v955, %v954
    %v995 = vpack.c.bf16 %v957, %v956
    %v996 = vpack.c.bf16 %v959, %v958
    %v997 = vpack.c.bf16 %v961, %v960
    %v998 = vpack.c.bf16 %v963, %v962
    %v999 = vpack.c.bf16 %v965, %v964
    %v1000 = vpack.c.bf16 %v967, %v966
    %v1001 = vpack.c.bf16 %v969, %v968
    %v1002 = vld [vmem:[%s8] sm:$0xff]
    %v1003 = vld [vmem:[%s8 + $0x8] sm:$0xff]
    %v1004 = vld [vmem:[%s8 + $0x10] sm:$0xff]
    %v1005 = vld [vmem:[%s8 + $0x18] sm:$0xff]
    %v1006 = vld [vmem:[%s8 + $0x20] sm:$0xff]
    %v1007 = vld [vmem:[%s8 + $0x28] sm:$0xff]
    %v1008 = vld [vmem:[%s8 + $0x30] sm:$0xff]
    %v1009 = vld [vmem:[%s8 + $0x38] sm:$0xff]
    %v1010 = vld [vmem:[%s8 + $0x40] sm:$0xff]
    %v1011 = vld [vmem:[%s8 + $0x48] sm:$0xff]
    %v1012 = vld [vmem:[%s8 + $0x50] sm:$0xff]
    %v1013 = vld [vmem:[%s8 + $0x58] sm:$0xff]
    %v1014 = vld [vmem:[%s8 + $0x60] sm:$0xff]
    %v1015 = vld [vmem:[%s8 + $0x68] sm:$0xff]
    %v1016 = vld [vmem:[%s8 + $0x70] sm:$0xff]
    %v1017 = vld [vmem:[%s8 + $0x78] sm:$0xff]
    %v1034 = vunpack.c.l.b16 %v1002
    %v1035 = vunpack.c.h.b16 %v1002
    %v1036 = vunpack.c.l.b16 %v1003
    %v1037 = vunpack.c.h.b16 %v1003
    %v1038 = vunpack.c.l.b16 %v1004
    %v1039 = vunpack.c.h.b16 %v1004
    %v1040 = vunpack.c.l.b16 %v1005
    %v1041 = vunpack.c.h.b16 %v1005
    %v1042 = vunpack.c.l.b16 %v1006
    %v1043 = vunpack.c.h.b16 %v1006
    %v1044 = vunpack.c.l.b16 %v1007
    %v1045 = vunpack.c.h.b16 %v1007
    %v1046 = vunpack.c.l.b16 %v1008
    %v1047 = vunpack.c.h.b16 %v1008
    %v1048 = vunpack.c.l.b16 %v1009
    %v1049 = vunpack.c.h.b16 %v1009
    %v1050 = vunpack.c.l.b16 %v1010
    %v1051 = vunpack.c.h.b16 %v1010
    %v1052 = vunpack.c.l.b16 %v1011
    %v1053 = vunpack.c.h.b16 %v1011
    %v1054 = vunpack.c.l.b16 %v1012
    %v1055 = vunpack.c.h.b16 %v1012
    %v1056 = vunpack.c.l.b16 %v1013
    %v1057 = vunpack.c.h.b16 %v1013
    %v1058 = vunpack.c.l.b16 %v1014
    %v1059 = vunpack.c.h.b16 %v1014
    %v1060 = vunpack.c.l.b16 %v1015
    %v1061 = vunpack.c.h.b16 %v1015
    %v1062 = vunpack.c.l.b16 %v1016
    %v1063 = vunpack.c.h.b16 %v1016
    %v1064 = vunpack.c.l.b16 %v1017
    %v1065 = vunpack.c.h.b16 %v1017
    %v1066 = vpack.c.b16 %v1036, %v1034
    %v1067 = vpack.c.b16 %v1037, %v1035
    %v1068 = vpack.c.b16 %v1040, %v1038
    %v1069 = vpack.c.b16 %v1041, %v1039
    %v1070 = vpack.c.b16 %v1044, %v1042
    %v1071 = vpack.c.b16 %v1045, %v1043
    %v1072 = vpack.c.b16 %v1048, %v1046
    %v1073 = vpack.c.b16 %v1049, %v1047
    %v1074 = vpack.c.b16 %v1052, %v1050
    %v1075 = vpack.c.b16 %v1053, %v1051
    %v1076 = vpack.c.b16 %v1056, %v1054
    %v1077 = vpack.c.b16 %v1057, %v1055
    %v1078 = vpack.c.b16 %v1060, %v1058
    %v1079 = vpack.c.b16 %v1061, %v1059
    %v1080 = vpack.c.b16 %v1064, %v1062
    %v1081 = vpack.c.b16 %v1065, %v1063
    %1098 = vmatprep.subr.bf16.mxu0 %v1067
    %1099 = vmatpush1.bf16.msra.mxu0 %v1066
    %1100 = vmatprep.subr.bf16.mxu0 %v1069
    %1101 = vmatpush1.bf16.msra.mxu0 %v1068
    %1102 = vmatprep.subr.bf16.mxu0 %v1071
    %1103 = vmatpush1.bf16.msra.mxu0 %v1070
    %1104 = vmatprep.subr.bf16.mxu0 %v1073
    %1105 = vmatpush1.bf16.msra.mxu0 %v1072
    %1106 = vmatprep.subr.bf16.mxu0 %v1075
    %1107 = vmatpush1.bf16.msra.mxu0 %v1074
    %1108 = vmatprep.subr.bf16.mxu0 %v1077
    %1109 = vmatpush1.bf16.msra.mxu0 %v1076
    %1110 = vmatprep.subr.bf16.mxu0 %v1079
    %1111 = vmatpush1.bf16.msra.mxu0 %v1078
    %1112 = vmatprep.subr.bf16.mxu0 %v1081
    %1113 = vmatpush1.bf16.msra.mxu0 %v1080
    %1114 = vmatprep.subr.bf16.mxu0 0
    %1115 = vmatpush1.bf16.msra.mxu0 0
    %1116 = vmatprep.subr.bf16.mxu0 0
    %1117 = vmatpush1.bf16.msra.mxu0 0
    %1118 = vmatprep.subr.bf16.mxu0 0
    %1119 = vmatpush1.bf16.msra.mxu0 0
    %1120 = vmatprep.subr.bf16.mxu0 0
    %1121 = vmatpush1.bf16.msra.mxu0 0
    %1122 = vmatprep.subr.bf16.mxu0 0
    %1123 = vmatpush1.bf16.msra.mxu0 0
    %1124 = vmatprep.subr.bf16.mxu0 0
    %1125 = vmatpush1.bf16.msra.mxu0 0
    %1126 = vmatprep.subr.bf16.mxu0 0
    %1127 = vmatpush1.bf16.msra.mxu0 0
    %1128 = vmatprep.subr.bf16.mxu0 0
    %1129 = vmatpush1.bf16.msra.mxu0 0
    %1130 = vmatprep.mubr.bf16.mxu0 0
    %1131 = vmatmul.mubr.bf16.gmra.mrb[0].mxu0 %v994
    %v1132 = vpop.f32.mrb[0].mxu0
    %v1133 = vadd.f32 0.0, %v1132
    %v1134 = vpop.f32.mrb[0].mxu0
    %v1135 = vadd.f32 0.0, %v1134
    %v1136 = vpop.f32.mrb[0].mxu0
    %v1137 = vadd.f32 0.0, %v1136
    %v1138 = vpop.f32.mrb[0].mxu0
    %v1139 = vadd.f32 0.0, %v1138
    %1140 = vmatprep.mubr.bf16.mxu0 0
    %1141 = vmatmul.mubr.bf16.gmra.mrb[0].mxu0 %v995
    %v1142 = vpop.f32.mrb[0].mxu0
    %v1143 = vadd.f32 0.0, %v1142
    %v1144 = vpop.f32.mrb[0].mxu0
    %v1145 = vadd.f32 0.0, %v1144
    %v1146 = vpop.f32.mrb[0].mxu0
    %v1147 = vadd.f32 0.0, %v1146
    %v1148 = vpop.f32.mrb[0].mxu0
    %v1149 = vadd.f32 0.0, %v1148
    %1150 = vmatprep.mubr.bf16.mxu0 0
    %1151 = vmatmul.mubr.bf16.gmra.mrb[0].mxu0 %v996
    %v1152 = vpop.f32.mrb[0].mxu0
    %v1153 = vadd.f32 0.0, %v1152
    %v1154 = vpop.f32.mrb[0].mxu0
    %v1155 = vadd.f32 0.0, %v1154
    %v1156 = vpop.f32.mrb[0].mxu0
    %v1157 = vadd.f32 0.0, %v1156
    %v1158 = vpop.f32.mrb[0].mxu0
    %v1159 = vadd.f32 0.0, %v1158
    %1160 = vmatprep.mubr.bf16.mxu0 0
    %1161 = vmatmul.mubr.bf16.gmra.mrb[0].mxu0 %v997
    %v1162 = vpop.f32.mrb[0].mxu0
    %v1163 = vadd.f32 0.0, %v1162
    %v1164 = vpop.f32.mrb[0].mxu0
    %v1165 = vadd.f32 0.0, %v1164
    %v1166 = vpop.f32.mrb[0].mxu0
    %v1167 = vadd.f32 0.0, %v1166
    %v1168 = vpop.f32.mrb[0].mxu0
    %v1169 = vadd.f32 0.0, %v1168
    %1170 = vmatprep.mubr.bf16.mxu0 0
    %1171 = vmatmul.mubr.bf16.gmra.mrb[0].mxu0 %v998
    %v1172 = vpop.f32.mrb[0].mxu0
    %v1173 = vadd.f32 0.0, %v1172
    %v1174 = vpop.f32.mrb[0].mxu0
    %v1175 = vadd.f32 0.0, %v1174
    %v1176 = vpop.f32.mrb[0].mxu0
    %v1177 = vadd.f32 0.0, %v1176
    %v1178 = vpop.f32.mrb[0].mxu0
    %v1179 = vadd.f32 0.0, %v1178
    %1180 = vmatprep.mubr.bf16.mxu0 0
    %1181 = vmatmul.mubr.bf16.gmra.mrb[0].mxu0 %v999
    %v1182 = vpop.f32.mrb[0].mxu0
    %v1183 = vadd.f32 0.0, %v1182
    %v1184 = vpop.f32.mrb[0].mxu0
    %v1185 = vadd.f32 0.0, %v1184
    %v1186 = vpop.f32.mrb[0].mxu0
    %v1187 = vadd.f32 0.0, %v1186
    %v1188 = vpop.f32.mrb[0].mxu0
    %v1189 = vadd.f32 0.0, %v1188
    %1190 = vmatprep.mubr.bf16.mxu0 0
    %1191 = vmatmul.mubr.bf16.gmra.mrb[0].mxu0 %v1000
    %v1192 = vpop.f32.mrb[0].mxu0
    %v1193 = vadd.f32 0.0, %v1192
    %v1194 = vpop.f32.mrb[0].mxu0
    %v1195 = vadd.f32 0.0, %v1194
    %v1196 = vpop.f32.mrb[0].mxu0
    %v1197 = vadd.f32 0.0, %v1196
    %v1198 = vpop.f32.mrb[0].mxu0
    %v1199 = vadd.f32 0.0, %v1198
    %1200 = vmatprep.mubr.bf16.mxu0 0
    %1201 = vmatmul.mubr.bf16.gmra.mrb[0].mxu0 %v1001
    %v1202 = vpop.f32.mrb[0].mxu0
    %v1203 = vadd.f32 0.0, %v1202
    %v1204 = vpop.f32.mrb[0].mxu0
    %v1205 = vadd.f32 0.0, %v1204
    %v1206 = vpop.f32.mrb[0].mxu0
    %v1207 = vadd.f32 0.0, %v1206
    %v1208 = vpop.f32.mrb[0].mxu0
    %v1209 = vadd.f32 0.0, %v1208
    %1210 = vdwg.mxu0
    %v1227 = vunpack.c.l.b16 %v978
    %v1228 = vunpack.c.h.b16 %v978
    %v1229 = vunpack.c.l.b16 %v979
    %v1230 = vunpack.c.h.b16 %v979
    %v1231 = vunpack.c.l.b16 %v980
    %v1232 = vunpack.c.h.b16 %v980
    %v1233 = vunpack.c.l.b16 %v981
    %v1234 = vunpack.c.h.b16 %v981
    %v1235 = vunpack.c.l.b16 %v982
    %v1236 = vunpack.c.h.b16 %v982
    %v1237 = vunpack.c.l.b16 %v983
    %v1238 = vunpack.c.h.b16 %v983
    %v1239 = vunpack.c.l.b16 %v984
    %v1240 = vunpack.c.h.b16 %v984
    %v1241 = vunpack.c.l.b16 %v985
    %v1242 = vunpack.c.h.b16 %v985
    %v1243 = vunpack.c.l.b16 %v986
    %v1244 = vunpack.c.h.b16 %v986
    %v1245 = vunpack.c.l.b16 %v987
    %v1246 = vunpack.c.h.b16 %v987
    %v1247 = vunpack.c.l.b16 %v988
    %v1248 = vunpack.c.h.b16 %v988
    %v1249 = vunpack.c.l.b16 %v989
    %v1250 = vunpack.c.h.b16 %v989
    %v1251 = vunpack.c.l.b16 %v990
    %v1252 = vunpack.c.h.b16 %v990
    %v1253 = vunpack.c.l.b16 %v991
    %v1254 = vunpack.c.h.b16 %v991
    %v1255 = vunpack.c.l.b16 %v992
    %v1256 = vunpack.c.h.b16 %v992
    %v1257 = vunpack.c.l.b16 %v993
    %v1258 = vunpack.c.h.b16 %v993
    %v1259 = vpack.c.b16 %v1229, %v1227
    %v1260 = vpack.c.b16 %v1230, %v1228
    %v1261 = vpack.c.b16 %v1233, %v1231
    %v1262 = vpack.c.b16 %v1234, %v1232
    %v1263 = vpack.c.b16 %v1237, %v1235
    %v1264 = vpack.c.b16 %v1238, %v1236
    %v1265 = vpack.c.b16 %v1241, %v1239
    %v1266 = vpack.c.b16 %v1242, %v1240
    %v1267 = vpack.c.b16 %v1245, %v1243
    %v1268 = vpack.c.b16 %v1246, %v1244
    %v1269 = vpack.c.b16 %v1249, %v1247
    %v1270 = vpack.c.b16 %v1250, %v1248
    %v1271 = vpack.c.b16 %v1253, %v1251
    %v1272 = vpack.c.b16 %v1254, %v1252
    %v1273 = vpack.c.b16 %v1257, %v1255
    %v1274 = vpack.c.b16 %v1258, %v1256
    %1291 = vmatprep.subr.bf16.mxu0 %v1260
    %1292 = vmatpush1.bf16.msra.mxu0 %v1259
    %1293 = vmatprep.subr.bf16.mxu0 %v1262
    %1294 = vmatpush1.bf16.msra.mxu0 %v1261
    %1295 = vmatprep.subr.bf16.mxu0 %v1264
    %1296 = vmatpush1.bf16.msra.mxu0 %v1263
    %1297 = vmatprep.subr.bf16.mxu0 %v1266
    %1298 = vmatpush1.bf16.msra.mxu0 %v1265
    %1299 = vmatprep.subr.bf16.mxu0 %v1268
    %1300 = vmatpush1.bf16.msra.mxu0 %v1267
    %1301 = vmatprep.subr.bf16.mxu0 %v1270
    %1302 = vmatpush1.bf16.msra.mxu0 %v1269
    %1303 = vmatprep.subr.bf16.mxu0 %v1272
    %1304 = vmatpush1.bf16.msra.mxu0 %v1271
    %1305 = vmatprep.subr.bf16.mxu0 %v1274
    %1306 = vmatpush1.bf16.msra.mxu0 %v1273
    %1307 = vmatprep.subr.bf16.mxu0 0
    %1308 = vmatpush1.bf16.msra.mxu0 0
    %1309 = vmatprep.subr.bf16.mxu0 0
    %1310 = vmatpush1.bf16.msra.mxu0 0
    %1311 = vmatprep.subr.bf16.mxu0 0
    %1312 = vmatpush1.bf16.msra.mxu0 0
    %1313 = vmatprep.subr.bf16.mxu0 0
    %1314 = vmatpush1.bf16.msra.mxu0 0
    %1315 = vmatprep.subr.bf16.mxu0 0
    %1316 = vmatpush1.bf16.msra.mxu0 0
    %1317 = vmatprep.subr.bf16.mxu0 0
    %1318 = vmatpush1.bf16.msra.mxu0 0
    %1319 = vmatprep.subr.bf16.mxu0 0
    %1320 = vmatpush1.bf16.msra.mxu0 0
    %1321 = vmatprep.subr.bf16.mxu0 0
    %1322 = vmatpush1.bf16.msra.mxu0 0
    %1323 = vmatprep.mubr.bf16.mxu0 0
    %1324 = vmatmul.mubr.bf16.gmra.mrb[0].mxu0 %v970
    %v1325 = vpop.f32.mrb[0].mxu0
    %v1326 = vadd.f32 %v1133, %v1325
    %v1327 = vpop.f32.mrb[0].mxu0
    %v1328 = vadd.f32 %v1135, %v1327
    %v1329 = vpop.f32.mrb[0].mxu0
    %v1330 = vadd.f32 %v1137, %v1329
    %v1331 = vpop.f32.mrb[0].mxu0
    %v1332 = vadd.f32 %v1139, %v1331
    %1333 = vmatprep.mubr.bf16.mxu0 0
    %1334 = vmatmul.mubr.bf16.gmra.mrb[0].mxu0 %v971
    %v1335 = vpop.f32.mrb[0].mxu0
    %v1336 = vadd.f32 %v1143, %v1335
    %v1337 = vpop.f32.mrb[0].mxu0
    %v1338 = vadd.f32 %v1145, %v1337
    %v1339 = vpop.f32.mrb[0].mxu0
    %v1340 = vadd.f32 %v1147, %v1339
    %v1341 = vpop.f32.mrb[0].mxu0
    %v1342 = vadd.f32 %v1149, %v1341
    %1343 = vmatprep.mubr.bf16.mxu0 0
    %1344 = vmatmul.mubr.bf16.gmra.mrb[0].mxu0 %v972
    %v1345 = vpop.f32.mrb[0].mxu0
    %v1346 = vadd.f32 %v1153, %v1345
    %v1347 = vpop.f32.mrb[0].mxu0
    %v1348 = vadd.f32 %v1155, %v1347
    %v1349 = vpop.f32.mrb[0].mxu0
    %v1350 = vadd.f32 %v1157, %v1349
    %v1351 = vpop.f32.mrb[0].mxu0
    %v1352 = vadd.f32 %v1159, %v1351
    %1353 = vmatprep.mubr.bf16.mxu0 0
    %1354 = vmatmul.mubr.bf16.gmra.mrb[0].mxu0 %v973
    %v1355 = vpop.f32.mrb[0].mxu0
    %v1356 = vadd.f32 %v1163, %v1355
    %v1357 = vpop.f32.mrb[0].mxu0
    %v1358 = vadd.f32 %v1165, %v1357
    %v1359 = vpop.f32.mrb[0].mxu0
    %v1360 = vadd.f32 %v1167, %v1359
    %v1361 = vpop.f32.mrb[0].mxu0
    %v1362 = vadd.f32 %v1169, %v1361
    %1363 = vmatprep.mubr.bf16.mxu0 0
    %1364 = vmatmul.mubr.bf16.gmra.mrb[0].mxu0 %v974
    %v1365 = vpop.f32.mrb[0].mxu0
    %v1366 = vadd.f32 %v1173, %v1365
    %v1367 = vpop.f32.mrb[0].mxu0
    %v1368 = vadd.f32 %v1175, %v1367
    %v1369 = vpop.f32.mrb[0].mxu0
    %v1370 = vadd.f32 %v1177, %v1369
    %v1371 = vpop.f32.mrb[0].mxu0
    %v1372 = vadd.f32 %v1179, %v1371
    %1373 = vmatprep.mubr.bf16.mxu0 0
    %1374 = vmatmul.mubr.bf16.gmra.mrb[0].mxu0 %v975
    %v1375 = vpop.f32.mrb[0].mxu0
    %v1376 = vadd.f32 %v1183, %v1375
    %v1377 = vpop.f32.mrb[0].mxu0
    %v1378 = vadd.f32 %v1185, %v1377
    %v1379 = vpop.f32.mrb[0].mxu0
    %v1380 = vadd.f32 %v1187, %v1379
    %v1381 = vpop.f32.mrb[0].mxu0
    %v1382 = vadd.f32 %v1189, %v1381
    %1383 = vmatprep.mubr.bf16.mxu0 0
    %1384 = vmatmul.mubr.bf16.gmra.mrb[0].mxu0 %v976
    %v1385 = vpop.f32.mrb[0].mxu0
    %v1386 = vadd.f32 %v1193, %v1385
    %v1387 = vpop.f32.mrb[0].mxu0
    %v1388 = vadd.f32 %v1195, %v1387
    %v1389 = vpop.f32.mrb[0].mxu0
    %v1390 = vadd.f32 %v1197, %v1389
    %v1391 = vpop.f32.mrb[0].mxu0
    %v1392 = vadd.f32 %v1199, %v1391
    %1393 = vmatprep.mubr.bf16.mxu0 0
    %1394 = vmatmul.mubr.bf16.gmra.mrb[0].mxu0 %v977
    %v1395 = vpop.f32.mrb[0].mxu0
    %v1396 = vadd.f32 %v1203, %v1395
    %v1397 = vpop.f32.mrb[0].mxu0
    %v1398 = vadd.f32 %v1205, %v1397
    %v1399 = vpop.f32.mrb[0].mxu0
    %v1400 = vadd.f32 %v1207, %v1399
    %v1401 = vpop.f32.mrb[0].mxu0
    %v1402 = vadd.f32 %v1209, %v1401
    %1403 = vdwg.mxu0
    %v1404 = vld [vmem:[%s9] sm:$0x3]
    %v1406 = vlaneseq
    %v1407 = vshrl.u32 %v1406, 7
    %v1408 = vsub.s32 0, %v1407
    %v1409 = vrot.slane %v1404, %v1408
    %v1410 = vlaneseq
    %v1411 = vshrl.u32 %v1410, 7
    %v1412 = vsub.s32 1, %v1411
    %v1413 = vrot.slane %v1404, %v1412
    %v1416 = vadd.f32 %v1326, %v1409
    %v1417 = vadd.f32 %v1328, %v1413
    %v1418 = vadd.f32 %v1330, %v1409
    %v1419 = vadd.f32 %v1332, %v1413
    %v1420 = vadd.f32 %v1336, %v1409
    %v1421 = vadd.f32 %v1338, %v1413
    %v1422 = vadd.f32 %v1340, %v1409
    %v1423 = vadd.f32 %v1342, %v1413
    %v1424 = vadd.f32 %v1346, %v1409
    %v1425 = vadd.f32 %v1348, %v1413
    %v1426 = vadd.f32 %v1350, %v1409
    %v1427 = vadd.f32 %v1352, %v1413
    %v1428 = vadd.f32 %v1356, %v1409
    %v1429 = vadd.f32 %v1358, %v1413
    %v1430 = vadd.f32 %v1360, %v1409
    %v1431 = vadd.f32 %v1362, %v1413
    %v1432 = vadd.f32 %v1366, %v1409
    %v1433 = vadd.f32 %v1368, %v1413
    %v1434 = vadd.f32 %v1370, %v1409
    %v1435 = vadd.f32 %v1372, %v1413
    %v1436 = vadd.f32 %v1376, %v1409
    %v1437 = vadd.f32 %v1378, %v1413
    %v1438 = vadd.f32 %v1380, %v1409
    %v1439 = vadd.f32 %v1382, %v1413
    %v1440 = vadd.f32 %v1386, %v1409
    %v1441 = vadd.f32 %v1388, %v1413
    %v1442 = vadd.f32 %v1390, %v1409
    %v1443 = vadd.f32 %v1392, %v1413
    %v1444 = vadd.f32 %v1396, %v1409
    %v1445 = vadd.f32 %v1398, %v1413
    %v1446 = vadd.f32 %v1400, %v1409
    %v1447 = vadd.f32 %v1402, %v1413
    %v1448 = vpack.c.bf16 %v1418, %v1416
    %v1449 = vpack.c.bf16 %v1422, %v1420
    %v1450 = vpack.c.bf16 %v1426, %v1424
    %v1451 = vpack.c.bf16 %v1430, %v1428
    %v1452 = vpack.c.bf16 %v1434, %v1432
    %v1453 = vpack.c.bf16 %v1438, %v1436
    %v1454 = vpack.c.bf16 %v1442, %v1440
    %v1455 = vpack.c.bf16 %v1446, %v1444
    %v1464 = vunpack.c.l.b16 %v1448
    %v1465 = vunpack.c.h.b16 %v1448
    %v1466 = vunpack.c.l.b16 %v1449
    %v1467 = vunpack.c.h.b16 %v1449
    %v1468 = vunpack.c.l.b16 %v1450
    %v1469 = vunpack.c.h.b16 %v1450
    %v1470 = vunpack.c.l.b16 %v1451
    %v1471 = vunpack.c.h.b16 %v1451
    %v1472 = vunpack.c.l.b16 %v1452
    %v1473 = vunpack.c.h.b16 %v1452
    %v1474 = vunpack.c.l.b16 %v1453
    %v1475 = vunpack.c.h.b16 %v1453
    %v1476 = vunpack.c.l.b16 %v1454
    %v1477 = vunpack.c.h.b16 %v1454
    %v1478 = vunpack.c.l.b16 %v1455
    %v1479 = vunpack.c.h.b16 %v1455
    %v1480 = vpack.c.b16 %v1464, %v1464
    %v1481 = vpack.c.b16 %v1465, %v1465
    %v1482 = vpack.c.b16 %v1466, %v1466
    %v1483 = vpack.c.b16 %v1467, %v1467
    %v1484 = vpack.c.b16 %v1468, %v1468
    %v1485 = vpack.c.b16 %v1469, %v1469
    %v1486 = vpack.c.b16 %v1470, %v1470
    %v1487 = vpack.c.b16 %v1471, %v1471
    %v1488 = vpack.c.b16 %v1472, %v1472
    %v1489 = vpack.c.b16 %v1473, %v1473
    %v1490 = vpack.c.b16 %v1474, %v1474
    %v1491 = vpack.c.b16 %v1475, %v1475
    %v1492 = vpack.c.b16 %v1476, %v1476
    %v1493 = vpack.c.b16 %v1477, %v1477
    %v1494 = vpack.c.b16 %v1478, %v1478
    %v1495 = vpack.c.b16 %v1479, %v1479
    %1512 = vst [vmem:[#allocation5] sm:$0xf] %v1480
    %1513 = vst [vmem:[#allocation5 + $0x4] sm:$0xf] %v1481
    %1514 = vst [vmem:[#allocation5 + $0x8] sm:$0xf] %v1482
    %1515 = vst [vmem:[#allocation5 + $0xc] sm:$0xf] %v1483
    %1516 = vst [vmem:[#allocation5 + $0x10] sm:$0xf] %v1484
    %1517 = vst [vmem:[#allocation5 + $0x14] sm:$0xf] %v1485
    %1518 = vst [vmem:[#allocation5 + $0x18] sm:$0xf] %v1486
    %1519 = vst [vmem:[#allocation5 + $0x1c] sm:$0xf] %v1487
    %1520 = vst [vmem:[#allocation5 + $0x20] sm:$0xf] %v1488
    %1521 = vst [vmem:[#allocation5 + $0x24] sm:$0xf] %v1489
    %1522 = vst [vmem:[#allocation5 + $0x28] sm:$0xf] %v1490
    %1523 = vst [vmem:[#allocation5 + $0x2c] sm:$0xf] %v1491
    %1524 = vst [vmem:[#allocation5 + $0x30] sm:$0xf] %v1492
    %1525 = vst [vmem:[#allocation5 + $0x34] sm:$0xf] %v1493
    %1526 = vst [vmem:[#allocation5 + $0x38] sm:$0xf] %v1494
    %1527 = vst [vmem:[#allocation5 + $0x3c] sm:$0xf] %v1495
    %1528 = vxpose.xlu0.b32.start [1/16] %v1417, 128
    %1529 = vxpose.xlu0.b32.cont [2/16] %v1419, 128
    %1530 = vxpose.xlu0.b32.cont [3/16] %v1421, 128
    %1531 = vxpose.xlu0.b32.cont [4/16] %v1423, 128
    %1532 = vxpose.xlu0.b32.cont [5/16] %v1425, 128
    %1533 = vxpose.xlu0.b32.cont [6/16] %v1427, 128
    %1534 = vxpose.xlu0.b32.cont [7/16] %v1429, 128
    %1535 = vxpose.xlu0.b32.cont [8/16] %v1431, 128
    %1536 = vxpose.xlu0.b32.cont [9/16] %v1433, 128
    %1537 = vxpose.xlu0.b32.cont [10/16] %v1435, 128
    %1538 = vxpose.xlu0.b32.cont [11/16] %v1437, 128
    %1539 = vxpose.xlu0.b32.cont [12/16] %v1439, 128
    %1540 = vxpose.xlu0.b32.cont [13/16] %v1441, 128
    %1541 = vxpose.xlu0.b32.cont [14/16] %v1443, 128
    %1542 = vxpose.xlu0.b32.cont [15/16] %v1445, 128
    %1543 = vxpose.xlu0.b32.end [16/16] %v1447, 128
    %v1544 = vpop.trf.xlu0
    %v1545 = vpop.trf.xlu0
    %v1546 = vpop.trf.xlu0
    %v1547 = vpop.trf.xlu0
    %v1548 = vpop.trf.xlu0
    %v1549 = vpop.trf.xlu0
    %v1550 = vpop.trf.xlu0
    %v1551 = vpop.trf.xlu0
    %v1552 = vpop.trf.xlu0
    %v1553 = vpop.trf.xlu0
    %v1554 = vpop.trf.xlu0
    %v1555 = vpop.trf.xlu0
    %v1556 = vpop.trf.xlu0
    %v1557 = vpop.trf.xlu0
    %v1558 = vpop.trf.xlu0
    %v1559 = vpop.trf.xlu0
    %v1560 = vpack.c.bf16 %v1545, %v1544
    %v1561 = vpack.c.bf16 %v1547, %v1546
    %v1562 = vpack.c.bf16 %v1549, %v1548
    %v1563 = vpack.c.bf16 %v1551, %v1550
    %v1564 = vpack.c.bf16 %v1553, %v1552
    %v1565 = vpack.c.bf16 %v1555, %v1554
    %v1566 = vpack.c.bf16 %v1557, %v1556
    %v1567 = vpack.c.bf16 %v1559, %v1558
    %v1576 = vunpack.c.l.b16 %v1560
    %v1577 = vunpack.c.h.b16 %v1560
    %v1578 = vunpack.c.l.b16 %v1561
    %v1579 = vunpack.c.h.b16 %v1561
    %v1580 = vunpack.c.l.b16 %v1562
    %v1581 = vunpack.c.h.b16 %v1562
    %v1582 = vunpack.c.l.b16 %v1563
    %v1583 = vunpack.c.h.b16 %v1563
    %v1584 = vunpack.c.l.b16 %v1564
    %v1585 = vunpack.c.h.b16 %v1564
    %v1586 = vunpack.c.l.b16 %v1565
    %v1587 = vunpack.c.h.b16 %v1565
    %v1588 = vunpack.c.l.b16 %v1566
    %v1589 = vunpack.c.h.b16 %v1566
    %v1590 = vunpack.c.l.b16 %v1567
    %v1591 = vunpack.c.h.b16 %v1567
    %v1592 = vpack.c.b16 %v1576, %v1576
    %v1593 = vpack.c.b16 %v1577, %v1577
    %v1594 = vpack.c.b16 %v1578, %v1578
    %v1595 = vpack.c.b16 %v1579, %v1579
    %v1596 = vpack.c.b16 %v1580, %v1580
    %v1597 = vpack.c.b16 %v1581, %v1581
    %v1598 = vpack.c.b16 %v1582, %v1582
    %v1599 = vpack.c.b16 %v1583, %v1583
    %v1600 = vpack.c.b16 %v1584, %v1584
    %v1601 = vpack.c.b16 %v1585, %v1585
    %v1602 = vpack.c.b16 %v1586, %v1586
    %v1603 = vpack.c.b16 %v1587, %v1587
    %v1604 = vpack.c.b16 %v1588, %v1588
    %v1605 = vpack.c.b16 %v1589, %v1589
    %v1606 = vpack.c.b16 %v1590, %v1590
    %v1607 = vpack.c.b16 %v1591, %v1591
    %1624 = vst [vmem:[#allocation6] sm:$0xf] %v1592
    %1625 = vst [vmem:[#allocation6 + $0x4] sm:$0xf] %v1593
    %1626 = vst [vmem:[#allocation6 + $0x8] sm:$0xf] %v1594
    %1627 = vst [vmem:[#allocation6 + $0xc] sm:$0xf] %v1595
    %1628 = vst [vmem:[#allocation6 + $0x10] sm:$0xf] %v1596
    %1629 = vst [vmem:[#allocation6 + $0x14] sm:$0xf] %v1597
    %1630 = vst [vmem:[#allocation6 + $0x18] sm:$0xf] %v1598
    %1631 = vst [vmem:[#allocation6 + $0x1c] sm:$0xf] %v1599
    %1632 = vst [vmem:[#allocation6 + $0x20] sm:$0xf] %v1600
    %1633 = vst [vmem:[#allocation6 + $0x24] sm:$0xf] %v1601
    %1634 = vst [vmem:[#allocation6 + $0x28] sm:$0xf] %v1602
    %1635 = vst [vmem:[#allocation6 + $0x2c] sm:$0xf] %v1603
    %1636 = vst [vmem:[#allocation6 + $0x30] sm:$0xf] %v1604
    %1637 = vst [vmem:[#allocation6 + $0x34] sm:$0xf] %v1605
    %1638 = vst [vmem:[#allocation6 + $0x38] sm:$0xf] %v1606
    %1639 = vst [vmem:[#allocation6 + $0x3c] sm:$0xf] %v1607
    // Predicated region
    $region46: #{tpu_custom_call.1} parent=1 // pred_check
      _
    $region47: #{tpu_custom_call.1} parent=1 // pred_check_branch
      %1641 = sbr.rel (0) target = $region49
    $region48: #{tpu_custom_call.1} parent=1 // pred_region
      %s1643 = ssub.s32 1024, 1024
      %1644 = vsyncadd [#allocation3], %s1643
      %s1645 = sshll.u32 [#allocation5], 4
      %s1646 = int_to_ptr.vmem [resolvable:$true] %s1645
      %1651 = dma.vmem_to_hbm [thread:$0]  %s1646, 1024, %s10, [#allocation3], 64, 64, 4
    $region49: #{tpu_custom_call.1} parent=1 // pred_fallthru
      _
    // Predicated region
    $region50: #{tpu_custom_call.1} parent=1 // pred_check
      _
    $region51: #{tpu_custom_call.1} parent=1 // pred_check_branch
      %1653 = sbr.rel (0) target = $region53
    $region52: #{tpu_custom_call.1} parent=1 // pred_region
      %s1655 = ssub.s32 1024, 1024
      %1656 = vsyncadd [#allocation7], %s1655
      %s1657 = sshll.u32 [#allocation6], 4
      %s1658 = int_to_ptr.vmem [resolvable:$true] %s1657
      %1663 = dma.vmem_to_hbm [thread:$0]  %s1658, 1024, %s11, [#allocation7], 64, 64, 4
    $region53: #{tpu_custom_call.1} parent=1 // pred_fallthru
      _
    // Predicated region
    $region54: #{tpu_custom_call.1} parent=1 // pred_check
      _
    $region55: #{tpu_custom_call.1} parent=1 // pred_check_branch
      %1665 = sbr.rel (0) target = $region57
    $region56: #{tpu_custom_call.1} parent=1 // pred_region
      %1666 = dma.done [#allocation3], 1024
    $region57: #{tpu_custom_call.1} parent=1 // pred_fallthru
      _
    // Predicated region
    $region58: #{tpu_custom_call.1} parent=1 // pred_check
      _
    $region59: #{tpu_custom_call.1} parent=1 // pred_check_branch
      %1668 = sbr.rel (0) target = $region61
    $region60: #{tpu_custom_call.1} parent=1 // pred_region
      %1669 = dma.done [#allocation7], 1024
    $region61: #{tpu_custom_call.1} parent=1 // pred_fallthru
      _
    %1670 = vsyncpa [#allocation3], 1
    %1671 = vsyncpa [#allocation7], 1
    %1672 = vsyncpa [#allocation4], 1

</llo_original>
